<compile_context>
chip_gen: v7x
topology: tpu7x:2x2x1
jax: 0.10.0
libtpu: 0.0.40
codegen_flags: <defaults>
</compile_context>

<pallas_src>
import functools

import jax
import jax.numpy as jnp
from jax.experimental import pallas as pl
from jax.experimental.pallas import tpu as pltpu

LEAKY_SLOPE = 0.2
K = 3
PAD = 1

# channel plan of every sub-discriminator (shared by MSD and MPD)
_BLOCK_CHANNELS = ((1, 32), (32, 64), (64, 128), (128, 256), (256, 512))
_SCORE_IN = 512

_DN = ("NCH", "OIH", "NCH")


# --------------------------------------------------------------------------- small helpers

def _leaky_relu(x):
    return jnp.where(x > 0, x, LEAKY_SLOPE * x)


def _row_iota(n):
    return jax.lax.broadcasted_iota(jnp.int32, (n, 1), 0)


# --------------------------------------------------------------------------- hardware-aware sizing

@functools.lru_cache(maxsize=1)
def _vmem_capacity_bytes():
    try:
        return int(pltpu.get_tpu_info().vmem_capacity_bytes)
    except Exception:  # pragma: no cover - conservative default (v7x per-TensorCore VMEM)
        return 64 * 1024 * 1024


def _vmem_limit_bytes():
    # ~96 MiB on v5e/v6e (128 MiB physical), ~48 MiB on v7x (64 MiB physical)
    return int(max(32 * 1024 * 1024,
                   min(_vmem_capacity_bytes() * 3 // 4, 112 * 1024 * 1024)))


def _tile_budget_bytes():
    return _vmem_limit_bytes() // 2


def _choose_tile_rows(seq_len, cin, cout, in_itemsize, out_itemsize, cd_itemsize,
                      *, fused, target=None):
    """Largest TL (multiple of 8, <= seq_len) that keeps the kernel inside scoped VMEM.

    Counts the double-buffered in/out blocks, the (double-buffered) weights and the
    dominant in-kernel temporaries (f32 shifted copies, K-folded concat, f32 h/acc/y),
    so block 5 (256->512) cannot push a v7x TensorCore into the spill regime.
    """
    if target is None:
        target = 2048 if cout <= 128 else 1024
    if fused:
        weight_bytes = 2 * (3 * cin * cout + 3 * cout * cout + 2 * cout) * cd_itemsize
        per_row = (2 * cin * in_itemsize + 2 * cout * out_itemsize
                   + 3 * cin * (4 + cd_itemsize)      # x shifts (f32) + X1_cat (compute dtype)
                   + 3 * cout * (4 + cd_itemsize)     # h shifts (f32) + X2_cat
                   + 3 * cout * 4)                    # acc / h / y (f32)
    else:
        weight_bytes = 2 * (3 * cin * cout + cout) * cd_itemsize
        per_row = (2 * cin * in_itemsize + 2 * cout * out_itemsize
                   + 3 * cin * (4 + cd_itemsize) + 2 * cout * 4)
    avail = _tile_budget_bytes() - weight_bytes - (1 << 20)
    max_rows = max(8, avail // per_row)
    tl = int(min(int(target), int(max_rows), int(seq_len)))
    return max(8, (tl // 8) * 8)


def _compiler_params():
    return pltpu.CompilerParams(
        # both axes independent -> shard across megacore / the 2 TCs of a v7x chip
        dimension_semantics=("parallel", "parallel"),
        vmem_limit_bytes=_vmem_limit_bytes(),
    )


# --------------------------------------------------------------------------- in-kernel compute

def _shifted_matmul(parts, w_cat, compute_dtype):
    """sum_k parts[k] @ w_cat[k*Cin:(k+1)*Cin]  ==  concat(parts, -1) @ w_cat, f32 acc.

    parts are f32 (M, Cin) arrays (the -1 / 0 / +1 shifted copies of the tile), so a
    single matmul with a 3x-deeper contraction feeds the MXU (3x the systolic-array row
    utilisation of three shallow matmuls).  For the Cin=1 first block the MXU would be
    ~1% utilised, so its taps run as VPU broadcast-FMA instead.
    """
    cin = parts[0].shape[-1]
    cout = w_cat.shape[-1]
    if cin < 4:
        acc = jnp.zeros((parts[0].shape[0], cout), jnp.float32)
        for k, p in enumerate(parts):
            for c in range(cin):
                w_row = w_cat[k * cin + c:k * cin + c + 1, :].astype(jnp.float32)
                acc = acc + p[:, c:c + 1] * w_row
        return acc
    x_cat = jnp.concatenate(parts, axis=-1).astype(compute_dtype)
    return jnp.dot(x_cat, w_cat, preferred_element_type=jnp.float32)


def _fused_block_kernel(xc_ref, xp_ref, xn_ref, w1_ref, b1_ref, w2_ref, b2_ref, o_ref,
                        *, seq_len, tile_l, ragged, compute_dtype):
    """Fused Conv1d(k3,p1) -> LeakyReLU -> Conv1d(k3,p1) -> LeakyReLU on one L-tile.

    xc_ref: (1, TL, Cin)  current tile (global rows [t0, t0+TL))
    xp_ref: (1, 8, Cin)   the 8 rows ending at t0        (left-halo source)
    xn_ref: (1, 8, Cin)   the 8 rows starting at t0+TL   (right-halo source, clamped)
    """
    j = pl.program_id(1)
    t0 = j * tile_l
    rows = _row_iota(tile_l)

    x = xc_ref[0]
    if ragged:                                      # static: only traced when grid over-covers L
        x = jnp.where((t0 + rows) < seq_len, x, 0.0)

    # halo rows: +-2 per side because two k=3 convs are fused
    xp = xp_ref[0]
    xn = xn_ref[0]
    has_left = j > 0
    r1_ok = (t0 + tile_l) < seq_len
    r2_ok = (t0 + tile_l + 1) < seq_len
    left2 = jnp.where(has_left, xp[6:7, :], 0.0)     # x[t0-2]
    left1 = jnp.where(has_left, xp[7:8, :], 0.0)     # x[t0-1]
    right1 = jnp.where(r1_ok, xn[0:1, :], 0.0)       # x[t0+TL]
    right2 = jnp.where(r2_ok, xn[1:2, :], 0.0)       # x[t0+TL+1]

    w1 = w1_ref[...]
    w2 = w2_ref[...]
    b1 = b1_ref[...].astype(jnp.float32)
    b2 = b2_ref[...].astype(jnp.float32)

    # ---- conv1 + LeakyReLU: shifts on the INPUT tile, K folded into one contraction ----
    x_dn = jnp.where(rows == 0, left1, pltpu.roll(x, shift=1, axis=0))                    # x[t-1]
    x_up = jnp.where(rows == tile_l - 1, right1, pltpu.roll(x, shift=tile_l - 1, axis=0))  # x[t+1]
    h = _leaky_relu(_shifted_matmul([x_dn, x, x_up], w1, compute_dtype) + b1)
    if ragged:
        h = jnp.where((t0 + rows) < seq_len, h, 0.0)  # rows >= L are conv2's zero pad

    # ---- the two h rows just outside the tile that conv2 needs (two tiny matmuls) ----
    hl = _leaky_relu(_shifted_matmul([left2, left1, x[0:1, :]], w1, compute_dtype) + b1)
    h_left = jnp.where(has_left, hl, 0.0)             # h[t0-1]
    hr = _leaky_relu(
        _shifted_matmul([x[tile_l - 1:tile_l, :], right1, right2], w1, compute_dtype) + b1)
    h_right = jnp.where(r1_ok, hr, 0.0)               # h[t0+TL]

    # ---- conv2 + LeakyReLU ----
    h_dn = jnp.where(rows == 0, h_left, pltpu.roll(h, shift=1, axis=0))
    h_up = jnp.where(rows == tile_l - 1, h_right, pltpu.roll(h, shift=tile_l - 1, axis=0))
    y = _leaky_relu(_shifted_matmul([h_dn, h, h_up], w2, compute_dtype) + b2)
    # TODO(synk): chained activations could be stored as bf16 (halved HBM traffic), but the
    # block outputs are also the returned feature tensors, so we keep f32.
    o_ref[0] = y.astype(o_ref.dtype)


def _conv3_kernel(xc_ref, xp_ref, xn_ref, w_ref, b_ref, o_ref,
                  *, seq_len, tile_l, ragged, compute_dtype):
    """Plain Conv1d(k3, stride=1, pad=1) + bias on one L-tile (score head)."""
    j = pl.program_id(1)
    t0 = j * tile_l
    rows = _row_iota(tile_l)
    x = xc_ref[0]
    if ragged:
        x = jnp.where((t0 + rows) < seq_len, x, 0.0)
    has_left = j > 0
    r1_ok = (t0 + tile_l) < seq_len
    left1 = jnp.where(has_left, xp_ref[0][7:8, :], 0.0)
    right1 = jnp.where(r1_ok, xn_ref[0][0:1, :], 0.0)
    x_dn = jnp.where(rows == 0, left1, pltpu.roll(x, shift=1, axis=0))
    x_up = jnp.where(rows == tile_l - 1, right1, pltpu.roll(x, shift=tile_l - 1, axis=0))
    y = _shifted_matmul([x_dn, x, x_up], w_ref[...], compute_dtype) + b_ref[...].astype(jnp.float32)
    # TODO(synk): the Cout=1 score output stays column layout (N, L, 1): the head is
    # input-bandwidth bound and a lane-dense (N, 1, L) store would need an in-kernel
    # (TL,1)->(1,TL) relayout.
    o_ref[0] = y.astype(o_ref.dtype)


# --------------------------------------------------------------------------- pure-XLA reference / fallbacks

def _conv1d_ref_ncl(x_ncl, w, b, stride=1):
    y = jax.lax.conv_general_dilated(x_ncl, w, (stride,), ((PAD, PAD),),
                                     dimension_numbers=_DN,
                                     precision=jax.lax.Precision.HIGHEST)
    return y + b[None, :, None]


def _conv1d_fast_ncl(x_ncl, w, b, stride=1):
    """bf16-operand, f32-accumulation conv (used by the stride=2 fallback path)."""
    y = jax.lax.conv_general_dilated(x_ncl.astype(jnp.bfloat16), w.astype(jnp.bfloat16),
                                     (stride,), ((PAD, PAD),), dimension_numbers=_DN,
                                     preferred_element_type=jnp.float32)
    return y + b[None, :, None]


def _avg_pool_ncl(x, k):
    n, c, l = x.shape
    l2 = (l // k) * k
    return x[:, :, :l2].reshape(n, c, l // k, k).mean(axis=-1)


def _avg_pool_rows(x, k):
    """AvgPool1d(k) over the last dim of a (B, T) tensor (non-overlapping windows)."""
    n, t = x.shape
    t2 = (t // k) * k
    return x[:, :t2].reshape(n, t // k, k).mean(axis=-1)


def _block_ref_ncl(x_ncl, w1, b1, w2, b2, stride=1):
    """Exact (f32 HIGHEST) DiscriminatorBlock - used only as a numerics reference."""
    h = _leaky_relu(_conv1d_ref_ncl(x_ncl, w1, b1, stride=stride))
    y = _leaky_relu(_conv1d_ref_ncl(h, w2, b2, stride=1))
    if stride == 2:
        y = _avg_pool_ncl(y, 2)
    return y


def _block_fast_ncl(x_ncl, w1, b1, w2, b2):
    """stride=2 DiscriminatorBlock as bf16 XLA convs (MSD fallback path).

    TODO(synk): stride=2 block not yet ported to Pallas (strided conv1 + fused AvgPool).
    """
    h = _leaky_relu(_conv1d_fast_ncl(x_ncl, w1, b1, stride=2))
    y = _leaky_relu(_conv1d_fast_ncl(h, w2, b2, stride=1))
    return _avg_pool_ncl(y, 2)


# --------------------------------------------------------------------------- Pallas wrappers

def _seq_tile_specs(tl, seq_len, cin):
    """BlockSpecs for the current L-tile plus two 8-row halo views of the same array."""
    tlb8 = tl // 8
    nblk8 = max(-(-seq_len // 8), 1)
    cur = pl.BlockSpec((1, tl, cin), lambda b, j: (b, j, 0))
    prev = pl.BlockSpec((1, 8, cin),
                        lambda b, j: (b, jnp.maximum(j * tlb8 - 1, 0), 0))
    nxt = pl.BlockSpec((1, 8, cin),
                       lambda b, j: (b, jnp.minimum((j + 1) * tlb8, nblk8 - 1), 0))
    return cur, prev, nxt


def _cat_to_torch(w_cat):
    kcin, cout = w_cat.shape
    cin = kcin // K
    return jnp.transpose(w_cat.reshape(K, cin, cout).astype(jnp.float32), (2, 1, 0))


def discriminator_block_nlc(x, w1_cat, b1_r, w2_cat, b2_r, *, tile_rows=None):
    """Fused stride=1 DiscriminatorBlock on channels-last input.

    x     : (N, L, Cin) float32 channels-last.
    w?_cat: (3*C, Cout) pre-transposed, pre-cast (bf16 by default) weights; b?_r: (1, Cout) f32.
    Returns (N, L, Cout) float32.
    """
    n, seq_len, cin = x.shape
    cout = w1_cat.shape[-1]
    if seq_len < 8:
        # TODO(synk): sequences shorter than one 8-row sublane tile fall back to XLA.
        y = _block_ref_ncl(jnp.transpose(x, (0, 2, 1)), _cat_to_torch(w1_cat), b1_r.reshape(-1),
                           _cat_to_torch(w2_cat), b2_r.reshape(-1), stride=1)
        return jnp.transpose(y, (0, 2, 1))

    compute_dtype = w1_cat.dtype
    cd_size = jnp.dtype(compute_dtype).itemsize
    tl = _choose_tile_rows(seq_len, cin, cout, x.dtype.itemsize, 4, cd_size,
                           fused=True, target=tile_rows)
    nt = pl.cdiv(seq_len, tl)
    ragged = (seq_len % tl) != 0

    cur, prev, nxt = _seq_tile_specs(tl, seq_len, cin)
    # TODO(synk): pipeline_mode=pl.Buffered(1) on the constant weight specs would reclaim
    # the second weight buffer; its VMEM is accounted for in _choose_tile_rows instead.
    in_specs = [
        cur, prev, nxt,
        pl.BlockSpec((K * cin, cout), lambda bb, jj: (0, 0)),
        pl.BlockSpec((1, cout), lambda bb, jj: (0, 0)),
        pl.BlockSpec((K * cout, cout), lambda bb, jj: (0, 0)),
        pl.BlockSpec((1, cout), lambda bb, jj: (0, 0)),
    ]
    out_spec = pl.BlockSpec((1, tl, cout), lambda bb, jj: (bb, jj, 0))

    flops = 2 * n * seq_len * K * (cin * cout + cout * cout) + 8 * n * seq_len * cout
    bytes_accessed = (x.size * x.dtype.itemsize + n * seq_len * cout * 4
                      + (w1_cat.size + w2_cat.size) * cd_size)
    kernel = functools.partial(_fused_block_kernel, seq_len=seq_len, tile_l=tl,
                               ragged=ragged, compute_dtype=compute_dtype)
    return pl.pallas_call(
        kernel,
        out_shape=jax.ShapeDtypeStruct((n, seq_len, cout), jnp.float32),
        grid_spec=pltpu.PrefetchScalarGridSpec(
            num_scalar_prefetch=0,
            grid=(n, nt),
            in_specs=in_specs,
            out_specs=out_spec,
        ),
        compiler_params=_compiler_params(),
        cost_estimate=pl.CostEstimate(flops=int(flops), transcendentals=0,
                                      bytes_accessed=int(bytes_accessed)),
    )(x, x, x, w1_cat, b1_r, w2_cat, b2_r)


def conv1d3_nlc(x, w_cat, b_r, *, tile_rows=None):
    """Conv1d(k=3, stride=1, pad=1) + bias on channels-last input (score head)."""
    n, seq_len, cin = x.shape
    cout = w_cat.shape[-1]
    if seq_len < 8:
        # TODO(synk): sequences shorter than one 8-row sublane tile fall back to XLA.
        y = _conv1d_ref_ncl(jnp.transpose(x, (0, 2, 1)), _cat_to_torch(w_cat),
                            b_r.reshape(-1), stride=1)
        return jnp.transpose(y, (0, 2, 1))

    compute_dtype = w_cat.dtype
    cd_size = jnp.dtype(compute_dtype).itemsize
    tl = _choose_tile_rows(seq_len, cin, cout, x.dtype.itemsize, 4, cd_size,
                           fused=False, target=tile_rows)
    nt = pl.cdiv(seq_len, tl)
    ragged = (seq_len % tl) != 0

    cur, prev, nxt = _seq_tile_specs(tl, seq_len, cin)
    in_specs = [cur, prev, nxt,
                pl.BlockSpec((K * cin, cout), lambda bb, jj: (0, 0)),
                pl.BlockSpec((1, cout), lambda bb, jj: (0, 0))]
    out_spec = pl.BlockSpec((1, tl, cout), lambda bb, jj: (bb, jj, 0))

    flops = 2 * n * seq_len * K * cin * cout + 2 * n * seq_len * cout
    bytes_accessed = (x.size * x.dtype.itemsize + n * seq_len * cout * 4
                      + w_cat.size * cd_size)
    kernel = functools.partial(_conv3_kernel, seq_len=seq_len, tile_l=tl,
                               ragged=ragged, compute_dtype=compute_dtype)
    return pl.pallas_call(
        kernel,
        out_shape=jax.ShapeDtypeStruct((n, seq_len, cout), jnp.float32),
        grid_spec=pltpu.PrefetchScalarGridSpec(
            num_scalar_prefetch=0, grid=(n, nt), in_specs=in_specs, out_specs=out_spec),
        compiler_params=_compiler_params(),
        cost_estimate=pl.CostEstimate(flops=int(flops), transcendentals=0,
                                      bytes_accessed=int(bytes_accessed)),
    )(x, x, x, w_cat, b_r)


# --------------------------------------------------------------------------- parameters

def _init_conv(key, cout, cin, k=K):
    kw, kb = jax.random.split(key)
    scale = (cin * k) ** -0.5
    w = scale * jax.random.normal(kw, (cout, cin, k), jnp.float32)
    b = scale * jax.random.normal(kb, (cout,), jnp.float32)
    return w, b


def _init_block(key, cin, cout):
    k1, k2 = jax.random.split(key)
    w1, b1 = _init_conv(k1, cout, cin)
    w2, b2 = _init_conv(k2, cout, cout)
    return {"w1": w1, "b1": b1, "w2": w2, "b2": b2}


def _init_discriminator(key):
    keys = jax.random.split(key, len(_BLOCK_CHANNELS) + 1)
    blocks = [_init_block(keys[i], cin, cout) for i, (cin, cout) in enumerate(_BLOCK_CHANNELS)]
    score_w, score_b = _init_conv(keys[-1], 1, _SCORE_IN)
    return {"blocks": blocks, "score_w": score_w, "score_b": score_b}


def init_vocoder_discriminator(key, num_scales, periods):
    k_msd, k_mpd = jax.random.split(key)
    msd = [_init_discriminator(k) for k in jax.random.split(k_msd, num_scales)]
    mpd = [_init_discriminator(k) for k in jax.random.split(k_mpd, len(periods))]
    return {"msd": msd, "mpd": mpd}


def _prep_conv(w, b, weight_dtype):
    """PyTorch (Cout, Cin, K) -> MXU-friendly (K*Cin, Cout) done ONCE, plus (1, Cout) f32 bias."""
    cout, cin, k = w.shape
    w_cat = jnp.transpose(w, (2, 1, 0)).reshape(k * cin, cout).astype(weight_dtype)
    return w_cat, b.reshape(1, cout).astype(jnp.float32)


def _prep_block(blk, weight_dtype):
    w1c, b1r = _prep_conv(blk["w1"], blk["b1"], weight_dtype)
    w2c, b2r = _prep_conv(blk["w2"], blk["b2"], weight_dtype)
    return dict(blk, w1_cat=w1c, b1_r=b1r, w2_cat=w2c, b2_r=b2r)


def prepare_params(params, use_bf16=True):
    """Pre-transpose / pre-cast all conv weights once (keeps the torch layout for fallbacks)."""
    wd = jnp.bfloat16 if use_bf16 else jnp.float32

    def prep_disc(d):
        swc, sbr = _prep_conv(d["score_w"], d["score_b"], wd)
        return dict(d, blocks=[_prep_block(b, wd) for b in d["blocks"]],
                    score_w_cat=swc, score_b_r=sbr)

    return {"msd": [prep_disc(d) for d in params["msd"]],
            "mpd": [prep_disc(d) for d in params["mpd"]]}


# --------------------------------------------------------------------------- module forward

def _mpd_fold(x, period):
    """(B, T) audio -> (B*period, t, 1) channels-last, zero padded to a period multiple.

    The reference applies nn.Conv1d to rearrange(pad(x), 'b (t p) -> b 1 t p'), which is
    invalid PyTorch (Conv1d needs 3-D input).  We use the standard multi-period
    interpretation: a 1-D conv along t applied independently to each period column
    (period folded into batch).  TODO(synk): revisit if the spec is fixed to Conv2d((3,1)).
    """
    b, t_len = x.shape
    padded_len = (t_len // period + 1) * period
    xp = jnp.pad(x, ((0, 0), (0, padded_len - t_len)))
    t = padded_len // period
    cur = jnp.transpose(xp.reshape(b, t, period), (0, 2, 1))   # (b, p, t)
    return cur.reshape(b * period, t, 1), t


def _mpd_unfold(y_nlc, batch, period):
    """(B*p, t, C) -> (B, C, t, p) (torch-like layout for the returned features/score)."""
    _, t, c = y_nlc.shape
    return jnp.transpose(y_nlc.reshape(batch, period, t, c), (0, 3, 2, 1))


def multi_period_discriminator(x, mpd_params, periods):
    batch = x.shape[0]
    results = []
    for period, disc in zip(periods, mpd_params):
        cur, _ = _mpd_fold(x, period)
        feats = []
        for blk in disc["blocks"]:
            cur = discriminator_block_nlc(cur, blk["w1_cat"], blk["b1_r"],
                                          blk["w2_cat"], blk["b2_r"])
            feats.append(_mpd_unfold(cur, batch, period))
        score = conv1d3_nlc(cur, disc["score_w_cat"], disc["score_b_r"])
        results.append((feats, _mpd_unfold(score, batch, period)))
    return results


def multi_scale_discriminator(x, msd_params):
    results = []
    audio = x
    for i, disc in enumerate(msd_params):
        if i > 0:
            audio = _avg_pool_rows(audio, 2 ** i)          # cumulative, as in the reference
        cur = audio[:, None, :]                            # (B, 1, L) NCL
        feats = []
        for blk in disc["blocks"]:
            # TODO(synk): stride=2 DiscriminatorBlock is not ported to Pallas yet; it runs
            # as bf16 XLA convs (f32 accumulation) instead of f32 HIGHEST.
            cur = _block_fast_ncl(cur, blk["w1"], blk["b1"], blk["w2"], blk["b2"])
            feats.append(cur)
        if cur.shape[-1] >= 8:
            score_nlc = conv1d3_nlc(jnp.transpose(cur, (0, 2, 1)),
                                    disc["score_w_cat"], disc["score_b_r"])
            score = jnp.transpose(score_nlc, (0, 2, 1))
        else:
            score = _conv1d_ref_ncl(cur, disc["score_w"], disc["score_b"])
        results.append((feats, score))
    return results


def vocoder_discriminator(x, prepped_params, *, periods):
    msd_out = multi_scale_discriminator(x, prepped_params["msd"])
    mpd_out = multi_period_discriminator(x, prepped_params["mpd"], periods)
    return msd_out, mpd_out


# --------------------------------------------------------------------------- reference for checks

def _mpd_ref_single(x, disc, period):
    """Pure-XLA f32 HIGHEST version of one multi-period branch (NCL layout internally)."""
    cur_nlc, _ = _mpd_fold(x, period)
    cur = jnp.transpose(cur_nlc, (0, 2, 1))                # (B*p, 1, t)
    feats = []
    for blk in disc["blocks"]:
        cur = _block_ref_ncl(cur, blk["w1"], blk["b1"], blk["w2"], blk["b2"], stride=1)
        feats.append(cur)
    score = _conv1d_ref_ncl(cur, disc["score_w"], disc["score_b"], stride=1)
    return feats, score


def _check_close(name, got, want, rel=1e-2, abs_tol=1e-3):
    err = float(jnp.max(jnp.abs(got.astype(jnp.float32) - want.astype(jnp.float32))))
    scale = float(jnp.max(jnp.abs(want)))
    if not err <= rel * scale + abs_tol:
        raise AssertionError(f"{name}: max |diff| = {err:.3e} (ref scale {scale:.3e})")


# --------------------------------------------------------------------------- demo / self-test

if __name__ == "__main__":
    root = jax.random.PRNGKey(0)
    k_params, k_audio, k_blk, k_xblk, k_conv, k_xconv = jax.random.split(root, 6)

    # ---- unit checks of the Pallas kernels: multi-tile grid, ragged tail, cross-tile halos ----
    blk = _init_block(k_blk, 16, 32)
    xs = jax.random.normal(k_xblk, (2, 75, 16), jnp.float32)   # 3 tiles of 32 rows, ragged tail
    want = jnp.transpose(
        _block_ref_ncl(jnp.transpose(xs, (0, 2, 1)), blk["w1"], blk["b1"], blk["w2"], blk["b2"]),
        (0, 2, 1))

    pf32 = _prep_block(blk, jnp.float32)
    got = discriminator_block_nlc(xs, pf32["w1_cat"], pf32["b1_r"], pf32["w2_cat"], pf32["b2_r"],
                                  tile_rows=32)
    _check_close("fused block f32", got, want)

    pbf16 = _prep_block(blk, jnp.bfloat16)
    got_bf = discriminator_block_nlc(xs, pbf16["w1_cat"], pbf16["b1_r"],
                                     pbf16["w2_cat"], pbf16["b2_r"], tile_rows=32)
    _check_close("fused block bf16", got_bf, want, rel=1e-1, abs_tol=5e-2)

    cw, cb = _init_conv(k_conv, 1, 24)                         # Cout=1 like the real score head
    xc = jax.random.normal(k_xconv, (2, 43, 24), jnp.float32)
    cwc, cbr = _prep_conv(cw, cb, jnp.float32)
    got_c = conv1d3_nlc(xc, cwc, cbr, tile_rows=16)
    want_c = jnp.transpose(_conv1d_ref_ncl(jnp.transpose(xc, (0, 2, 1)), cw, cb), (0, 2, 1))
    _check_close("score conv f32", got_c, want_c)

    # ---- full VocoderDiscriminator forward (MSD + MPD), bf16 MXU operands by default ----
    PERIODS = (2, 3)
    NUM_SCALES = 2
    BATCH, T = 2, 2048
    params = init_vocoder_discriminator(k_params, NUM_SCALES, PERIODS)
    prepped = prepare_params(params, use_bf16=True)            # weights cast/transposed once
    audio = jax.random.normal(k_audio, (BATCH, T), jnp.float32)

    msd_out, mpd_out = vocoder_discriminator(audio, prepped, periods=PERIODS)
    jax.block_until_ready((msd_out, mpd_out))

    assert len(msd_out) == NUM_SCALES and len(mpd_out) == len(PERIODS)
    assert all(len(f) == len(_BLOCK_CHANNELS) for f, _ in msd_out)
    assert all(len(f) == len(_BLOCK_CHANNELS) for f, _ in mpd_out)
    assert msd_out[0][1].shape == (BATCH, 1, T // 4 ** len(_BLOCK_CHANNELS))
    assert mpd_out[0][1].shape == (BATCH, 1, T // PERIODS[0] + 1, PERIODS[0])

    # end-to-end numeric check of the (all-Pallas, bf16) multi-period branch, first period
    period0 = PERIODS[0]
    ref_feats, ref_score = _mpd_ref_single(audio, params["mpd"][0], period0)
    to_torch = lambda y_ncl: _mpd_unfold(jnp.transpose(y_ncl, (0, 2, 1)), BATCH, period0)
    _check_close("MPD end-to-end score", mpd_out[0][1], to_torch(ref_score),
                 rel=1e-1, abs_tol=5e-2)
    _check_close("MPD end-to-end feature[-1]", mpd_out[0][0][-1], to_torch(ref_feats[-1]),
                 rel=1e-1, abs_tol=5e-2)

    print("KERNEL_OK")
</pallas_src>

<mosaic_0001>
module attributes {stable_mosaic.version = 11 : i64} {
  func.func @_fused_block_kernel(%arg0: i32, %arg1: i32, %arg2: memref<1x32x16xf32, #tpu.memory_space<vmem>>, %arg3: memref<1x8x16xf32, #tpu.memory_space<vmem>>, %arg4: memref<1x8x16xf32, #tpu.memory_space<vmem>>, %arg5: memref<48x32xf32, #tpu.memory_space<vmem>>, %arg6: memref<1x32xf32, #tpu.memory_space<vmem>>, %arg7: memref<96x32xf32, #tpu.memory_space<vmem>>, %arg8: memref<1x32xf32, #tpu.memory_space<vmem>>, %arg9: memref<1x32x32xf32, #tpu.memory_space<vmem>>) attributes {dimension_semantics = [#tpu.dimension_semantics<parallel>, #tpu.dimension_semantics<parallel>], iteration_bounds = array<i64: 2, 3>, scalar_prefetch = 0 : i64, scratch_operands = 0 : i64, tpu.core_type = #tpu.core_type<tc>, window_params = [{transform_indices = @transform_0, window_bounds = array<i64: 1, 32, 16>}, {transform_indices = @transform_1, window_bounds = array<i64: 1, 8, 16>}, {transform_indices = @transform_2, window_bounds = array<i64: 1, 8, 16>}, {pipeline_mode = #tpu.pipeline_mode<synchronous>, transform_indices = @transform_3, window_bounds = array<i64: 48, 32>}, {pipeline_mode = #tpu.pipeline_mode<synchronous>, transform_indices = @transform_4, window_bounds = array<i64: 1, 32>}, {pipeline_mode = #tpu.pipeline_mode<synchronous>, transform_indices = @transform_5, window_bounds = array<i64: 96, 32>}, {pipeline_mode = #tpu.pipeline_mode<synchronous>, transform_indices = @transform_6, window_bounds = array<i64: 1, 32>}, {transform_indices = @transform_7, window_bounds = array<i64: 1, 32, 32>}]} {
    %c32_i32 = arith.constant 32 : i32
    %0 = arith.muli %arg1, %c32_i32 : i32
    %1 = tpu.iota {dimensions = array<i32: 0>} : vector<32x1xi32>
    %c0 = arith.constant 0 : index
    %c0_0 = arith.constant 0 : index
    %c0_1 = arith.constant 0 : index
    %2 = vector.load %arg2[%c0, %c0_0, %c0_1] : memref<1x32x16xf32, #tpu.memory_space<vmem>>, vector<1x32x16xf32>
    %3 = vector.shape_cast %2 : vector<1x32x16xf32> to vector<32x16xf32>
    %4 = vector.broadcast %0 : i32 to vector<32x1xi32>
    %5 = arith.addi %4, %1 : vector<32x1xi32>
    %c75_i32 = arith.constant 75 : i32
    %6 = vector.broadcast %c75_i32 : i32 to vector<32x1xi32>
    %7 = arith.cmpi slt, %5, %6 : vector<32x1xi32>
    %cst = arith.constant 0.000000e+00 : f32
    %8 = vector.shape_cast %7 : vector<32x1xi1> to vector<32x1xi1>
    %9 = vector.broadcast %8 : vector<32x1xi1> to vector<32x16xi1>
    %10 = vector.broadcast %cst : f32 to vector<32x16xf32>
    %11 = arith.select %9, %3, %10 : vector<32x16xi1>, vector<32x16xf32>
    %c0_2 = arith.constant 0 : index
    %c0_3 = arith.constant 0 : index
    %c0_4 = arith.constant 0 : index
    %12 = vector.load %arg3[%c0_2, %c0_3, %c0_4] : memref<1x8x16xf32, #tpu.memory_space<vmem>>, vector<1x8x16xf32>
    %13 = vector.shape_cast %12 : vector<1x8x16xf32> to vector<8x16xf32>
    %c0_5 = arith.constant 0 : index
    %c0_6 = arith.constant 0 : index
    %c0_7 = arith.constant 0 : index
    %14 = vector.load %arg4[%c0_5, %c0_6, %c0_7] : memref<1x8x16xf32, #tpu.memory_space<vmem>>, vector<1x8x16xf32>
    %15 = vector.shape_cast %14 : vector<1x8x16xf32> to vector<8x16xf32>
    %c0_i32 = arith.constant 0 : i32
    %16 = arith.cmpi sgt, %arg1, %c0_i32 : i32
    %c32_i32_8 = arith.constant 32 : i32
    %17 = arith.addi %0, %c32_i32_8 : i32
    %c75_i32_9 = arith.constant 75 : i32
    %18 = arith.cmpi slt, %17, %c75_i32_9 : i32
    %c32_i32_10 = arith.constant 32 : i32
    %19 = arith.addi %0, %c32_i32_10 : i32
    %c1_i32 = arith.constant 1 : i32
    %20 = arith.addi %19, %c1_i32 : i32
    %c75_i32_11 = arith.constant 75 : i32
    %21 = arith.cmpi slt, %20, %c75_i32_11 : i32
    %22 = vector.extract_strided_slice %13 {offsets = [6, 0], sizes = [1, 16], strides = [1, 1]} : vector<8x16xf32> to vector<1x16xf32>
    %cst_12 = arith.constant 0.000000e+00 : f32
    %23 = vector.broadcast %cst_12 : f32 to vector<1x16xf32>
    %24 = arith.select %16, %22, %23 : vector<1x16xf32>
    %25 = vector.extract_strided_slice %13 {offsets = [7, 0], sizes = [1, 16], strides = [1, 1]} : vector<8x16xf32> to vector<1x16xf32>
    %cst_13 = arith.constant 0.000000e+00 : f32
    %26 = vector.broadcast %cst_13 : f32 to vector<1x16xf32>
    %27 = arith.select %16, %25, %26 : vector<1x16xf32>
    %28 = vector.extract_strided_slice %15 {offsets = [0, 0], sizes = [1, 16], strides = [1, 1]} : vector<8x16xf32> to vector<1x16xf32>
    %cst_14 = arith.constant 0.000000e+00 : f32
    %29 = vector.broadcast %cst_14 : f32 to vector<1x16xf32>
    %30 = arith.select %18, %28, %29 : vector<1x16xf32>
    %31 = vector.extract_strided_slice %15 {offsets = [1, 0], sizes = [1, 16], strides = [1, 1]} : vector<8x16xf32> to vector<1x16xf32>
    %cst_15 = arith.constant 0.000000e+00 : f32
    %32 = vector.broadcast %cst_15 : f32 to vector<1x16xf32>
    %33 = arith.select %21, %31, %32 : vector<1x16xf32>
    %c0_16 = arith.constant 0 : index
    %c0_17 = arith.constant 0 : index
    %34 = vector.load %arg5[%c0_16, %c0_17] : memref<48x32xf32, #tpu.memory_space<vmem>>, vector<48x32xf32>
    %c0_18 = arith.constant 0 : index
    %c0_19 = arith.constant 0 : index
    %35 = vector.load %arg7[%c0_18, %c0_19] : memref<96x32xf32, #tpu.memory_space<vmem>>, vector<96x32xf32>
    %c0_20 = arith.constant 0 : index
    %c0_21 = arith.constant 0 : index
    %36 = vector.load %arg6[%c0_20, %c0_21] : memref<1x32xf32, #tpu.memory_space<vmem>>, vector<1x32xf32>
    %c0_22 = arith.constant 0 : index
    %c0_23 = arith.constant 0 : index
    %37 = vector.load %arg8[%c0_22, %c0_23] : memref<1x32xf32, #tpu.memory_space<vmem>>, vector<1x32xf32>
    %c0_i32_24 = arith.constant 0 : i32
    %38 = vector.broadcast %c0_i32_24 : i32 to vector<32x1xi32>
    %39 = arith.cmpi eq, %1, %38 : vector<32x1xi32>
    %c1_i32_25 = arith.constant 1 : i32
    %40 = tpu.dynamic_rotate %11 by %c1_i32_25 dim 0 : vector<32x16xf32>, i32 -> vector<32x16xf32>
    %41 = vector.shape_cast %39 : vector<32x1xi1> to vector<32x1xi1>
    %42 = vector.broadcast %41 : vector<32x1xi1> to vector<32x16xi1>
    %43 = vector.shape_cast %27 : vector<1x16xf32> to vector<1x16xf32>
    %44 = vector.broadcast %43 : vector<1x16xf32> to vector<32x16xf32>
    %45 = arith.select %42, %44, %40 : vector<32x16xi1>, vector<32x16xf32>
    %c31_i32 = arith.constant 31 : i32
    %46 = vector.broadcast %c31_i32 : i32 to vector<32x1xi32>
    %47 = arith.cmpi eq, %1, %46 : vector<32x1xi32>
    %c31_i32_26 = arith.constant 31 : i32
    %48 = tpu.dynamic_rotate %11 by %c31_i32_26 dim 0 : vector<32x16xf32>, i32 -> vector<32x16xf32>
    %49 = vector.shape_cast %47 : vector<32x1xi1> to vector<32x1xi1>
    %50 = vector.broadcast %49 : vector<32x1xi1> to vector<32x16xi1>
    %51 = vector.shape_cast %30 : vector<1x16xf32> to vector<1x16xf32>
    %52 = vector.broadcast %51 : vector<1x16xf32> to vector<32x16xf32>
    %53 = arith.select %50, %52, %48 : vector<32x16xi1>, vector<32x16xf32>
    %54 = tpu.concatenate %45, %11, %53 in 1 : vector<32x16xf32>, vector<32x16xf32>, vector<32x16xf32> -> vector<32x48xf32>
    %cst_27 = arith.constant dense<0.000000e+00> : vector<32x32xf32>
    %55 = tpu.matmul %54, %34, %cst_27 {dimension_numbers = #tpu.dot_dimension_numbers<[1], [0], [0], [1], [0, 0, 1, 1], [], []>} : vector<32x48xf32>, vector<48x32xf32>, vector<32x32xf32> -> vector<32x32xf32>
    %56 = vector.broadcast %36 : vector<1x32xf32> to vector<32x32xf32>
    %57 = arith.addf %55, %56 : vector<32x32xf32>
    %cst_28 = arith.constant 0.000000e+00 : f32
    %58 = vector.broadcast %cst_28 : f32 to vector<32x32xf32>
    %59 = arith.cmpf ogt, %57, %58 : vector<32x32xf32>
    %cst_29 = arith.constant 2.000000e-01 : f32
    %60 = vector.broadcast %cst_29 : f32 to vector<32x32xf32>
    %61 = arith.mulf %60, %57 : vector<32x32xf32>
    %62 = arith.select %59, %57, %61 : vector<32x32xi1>, vector<32x32xf32>
    %63 = vector.broadcast %0 : i32 to vector<32x1xi32>
    %64 = arith.addi %63, %1 : vector<32x1xi32>
    %c75_i32_30 = arith.constant 75 : i32
    %65 = vector.broadcast %c75_i32_30 : i32 to vector<32x1xi32>
    %66 = arith.cmpi slt, %64, %65 : vector<32x1xi32>
    %cst_31 = arith.constant 0.000000e+00 : f32
    %67 = vector.shape_cast %66 : vector<32x1xi1> to vector<32x1xi1>
    %68 = vector.broadcast %67 : vector<32x1xi1> to vector<32x32xi1>
    %69 = vector.broadcast %cst_31 : f32 to vector<32x32xf32>
    %70 = arith.select %68, %62, %69 : vector<32x32xi1>, vector<32x32xf32>
    %71 = vector.extract_strided_slice %11 {offsets = [0, 0], sizes = [1, 16], strides = [1, 1]} : vector<32x16xf32> to vector<1x16xf32>
    %72 = tpu.concatenate %24, %27, %71 in 1 : vector<1x16xf32>, vector<1x16xf32>, vector<1x16xf32> -> vector<1x48xf32>
    %cst_32 = arith.constant dense<0.000000e+00> : vector<1x32xf32>
    %73 = tpu.matmul %72, %34, %cst_32 {dimension_numbers = #tpu.dot_dimension_numbers<[1], [0], [0], [1], [0, 0, 1, 1], [], []>} : vector<1x48xf32>, vector<48x32xf32>, vector<1x32xf32> -> vector<1x32xf32>
    %74 = arith.addf %73, %36 : vector<1x32xf32>
    %cst_33 = arith.constant 0.000000e+00 : f32
    %75 = vector.broadcast %cst_33 : f32 to vector<1x32xf32>
    %76 = arith.cmpf ogt, %74, %75 : vector<1x32xf32>
    %cst_34 = arith.constant 2.000000e-01 : f32
    %77 = vector.broadcast %cst_34 : f32 to vector<1x32xf32>
    %78 = arith.mulf %77, %74 : vector<1x32xf32>
    %79 = arith.select %76, %74, %78 : vector<1x32xi1>, vector<1x32xf32>
    %cst_35 = arith.constant 0.000000e+00 : f32
    %80 = vector.broadcast %cst_35 : f32 to vector<1x32xf32>
    %81 = arith.select %16, %79, %80 : vector<1x32xf32>
    %82 = vector.extract_strided_slice %11 {offsets = [31, 0], sizes = [1, 16], strides = [1, 1]} : vector<32x16xf32> to vector<1x16xf32>
    %83 = tpu.concatenate %82, %30, %33 in 1 : vector<1x16xf32>, vector<1x16xf32>, vector<1x16xf32> -> vector<1x48xf32>
    %cst_36 = arith.constant dense<0.000000e+00> : vector<1x32xf32>
    %84 = tpu.matmul %83, %34, %cst_36 {dimension_numbers = #tpu.dot_dimension_numbers<[1], [0], [0], [1], [0, 0, 1, 1], [], []>} : vector<1x48xf32>, vector<48x32xf32>, vector<1x32xf32> -> vector<1x32xf32>
    %85 = arith.addf %84, %36 : vector<1x32xf32>
    %cst_37 = arith.constant 0.000000e+00 : f32
    %86 = vector.broadcast %cst_37 : f32 to vector<1x32xf32>
    %87 = arith.cmpf ogt, %85, %86 : vector<1x32xf32>
    %cst_38 = arith.constant 2.000000e-01 : f32
    %88 = vector.broadcast %cst_38 : f32 to vector<1x32xf32>
    %89 = arith.mulf %88, %85 : vector<1x32xf32>
    %90 = arith.select %87, %85, %89 : vector<1x32xi1>, vector<1x32xf32>
    %cst_39 = arith.constant 0.000000e+00 : f32
    %91 = vector.broadcast %cst_39 : f32 to vector<1x32xf32>
    %92 = arith.select %18, %90, %91 : vector<1x32xf32>
    %c0_i32_40 = arith.constant 0 : i32
    %93 = vector.broadcast %c0_i32_40 : i32 to vector<32x1xi32>
    %94 = arith.cmpi eq, %1, %93 : vector<32x1xi32>
    %c1_i32_41 = arith.constant 1 : i32
    %95 = tpu.dynamic_rotate %70 by %c1_i32_41 dim 0 : vector<32x32xf32>, i32 -> vector<32x32xf32>
    %96 = vector.shape_cast %94 : vector<32x1xi1> to vector<32x1xi1>
    %97 = vector.broadcast %96 : vector<32x1xi1> to vector<32x32xi1>
    %98 = vector.shape_cast %81 : vector<1x32xf32> to vector<1x32xf32>
    %99 = vector.broadcast %98 : vector<1x32xf32> to vector<32x32xf32>
    %100 = arith.select %97, %99, %95 : vector<32x32xi1>, vector<32x32xf32>
    %c31_i32_42 = arith.constant 31 : i32
    %101 = vector.broadcast %c31_i32_42 : i32 to vector<32x1xi32>
    %102 = arith.cmpi eq, %1, %101 : vector<32x1xi32>
    %c31_i32_43 = arith.constant 31 : i32
    %103 = tpu.dynamic_rotate %70 by %c31_i32_43 dim 0 : vector<32x32xf32>, i32 -> vector<32x32xf32>
    %104 = vector.shape_cast %102 : vector<32x1xi1> to vector<32x1xi1>
    %105 = vector.broadcast %104 : vector<32x1xi1> to vector<32x32xi1>
    %106 = vector.shape_cast %92 : vector<1x32xf32> to vector<1x32xf32>
    %107 = vector.broadcast %106 : vector<1x32xf32> to vector<32x32xf32>
    %108 = arith.select %105, %107, %103 : vector<32x32xi1>, vector<32x32xf32>
    %109 = tpu.concatenate %100, %70, %108 in 1 : vector<32x32xf32>, vector<32x32xf32>, vector<32x32xf32> -> vector<32x96xf32>
    %cst_44 = arith.constant dense<0.000000e+00> : vector<32x32xf32>
    %110 = tpu.matmul %109, %35, %cst_44 {dimension_numbers = #tpu.dot_dimension_numbers<[1], [0], [0], [1], [0, 0, 1, 1], [], []>} : vector<32x96xf32>, vector<96x32xf32>, vector<32x32xf32> -> vector<32x32xf32>
    %111 = vector.broadcast %37 : vector<1x32xf32> to vector<32x32xf32>
    %112 = arith.addf %110, %111 : vector<32x32xf32>
    %cst_45 = arith.constant 0.000000e+00 : f32
    %113 = vector.broadcast %cst_45 : f32 to vector<32x32xf32>
    %114 = arith.cmpf ogt, %112, %113 : vector<32x32xf32>
    %cst_46 = arith.constant 2.000000e-01 : f32
    %115 = vector.broadcast %cst_46 : f32 to vector<32x32xf32>
    %116 = arith.mulf %115, %112 : vector<32x32xf32>
    %117 = arith.select %114, %112, %116 : vector<32x32xi1>, vector<32x32xf32>
    %c0_47 = arith.constant 0 : index
    %c0_48 = arith.constant 0 : index
    %c0_49 = arith.constant 0 : index
    %118 = vector.load %arg9[%c0_47, %c0_48, %c0_49] : memref<1x32x32xf32, #tpu.memory_space<vmem>>, vector<1x32x32xf32>
    %119 = vector.shape_cast %118 : vector<1x32x32xf32> to vector<32x32xf32>
    %120 = vector.shape_cast %117 : vector<32x32xf32> to vector<1x32x32xf32>
    tpu.vector_store %arg9[%c0_47, %c0_48, %c0_49], %120 {strides = array<i32>} : memref<1x32x32xf32, #tpu.memory_space<vmem>>, vector<1x32x32xf32>,
    return
  }
  func.func @transform_0(%arg0: i32, %arg1: i32) -> (i32, i32, i32) {
    %c0_i32 = arith.constant 0 : i32
    %c0_i32_0 = arith.constant 0 : i32
    return %arg0, %arg1, %c0_i32 : i32, i32, i32
  }
  func.func @transform_1(%arg0: i32, %arg1: i32) -> (i32, i32, i32) {
    %c4_i32 = arith.constant 4 : i32
    %0 = arith.muli %arg1, %c4_i32 : i32
    %c1_i32 = arith.constant 1 : i32
    %1 = arith.subi %0, %c1_i32 : i32
    %c0_i32 = arith.constant 0 : i32
    %2 = arith.maxsi %1, %c0_i32 : i32
    %c0_i32_0 = arith.constant 0 : i32
    %c0_i32_1 = arith.constant 0 : i32
    return %arg0, %2, %c0_i32_0 : i32, i32, i32
  }
  func.func @transform_2(%arg0: i32, %arg1: i32) -> (i32, i32, i32) {
    %c1_i32 = arith.constant 1 : i32
    %0 = arith.addi %arg1, %c1_i32 : i32
    %c4_i32 = arith.constant 4 : i32
    %1 = arith.muli %0, %c4_i32 : i32
    %c9_i32 = arith.constant 9 : i32
    %2 = arith.minsi %1, %c9_i32 : i32
    %c0_i32 = arith.constant 0 : i32
    %c0_i32_0 = arith.constant 0 : i32
    return %arg0, %2, %c0_i32 : i32, i32, i32
  }
  func.func @transform_3(%arg0: i32, %arg1: i32) -> (i32, i32) {
    %c0_i32 = arith.constant 0 : i32
    %c0_i32_0 = arith.constant 0 : i32
    %c0_i32_1 = arith.constant 0 : i32
    return %c0_i32, %c0_i32_0 : i32, i32
  }
  func.func @transform_4(%arg0: i32, %arg1: i32) -> (i32, i32) {
    %c0_i32 = arith.constant 0 : i32
    %c0_i32_0 = arith.constant 0 : i32
    %c0_i32_1 = arith.constant 0 : i32
    return %c0_i32, %c0_i32_0 : i32, i32
  }
  func.func @transform_5(%arg0: i32, %arg1: i32) -> (i32, i32) {
    %c0_i32 = arith.constant 0 : i32
    %c0_i32_0 = arith.constant 0 : i32
    %c0_i32_1 = arith.constant 0 : i32
    return %c0_i32, %c0_i32_0 : i32, i32
  }
  func.func @transform_6(%arg0: i32, %arg1: i32) -> (i32, i32) {
    %c0_i32 = arith.constant 0 : i32
    %c0_i32_0 = arith.constant 0 : i32
    %c0_i32_1 = arith.constant 0 : i32
    return %c0_i32, %c0_i32_0 : i32, i32
  }
  func.func @transform_7(%arg0: i32, %arg1: i32) -> (i32, i32, i32) {
    %c0_i32 = arith.constant 0 : i32
    %c0_i32_0 = arith.constant 0 : i32
    return %arg0, %arg1, %c0_i32 : i32, i32, i32
  }
}

</mosaic_0001>

<llo_original>
// kernel: tpu_custom_call.1
$region0: #{tpu_custom_call.1}
  #allocation0 [shape = 'u32[]', space=smem, size = 0x4, offset = 0x4, fixed_abs, tag = 'smem constant byte address 0x4 - core index']
  #allocation1 [shape = 'u32[144,128]{1,0:T(1,128)}', space=vmem, size = 0x12000, scoped, tag = 'internal scratch']
  %s0 = inlined_call_operand.vmem [shape: f32[2,75,16], index: 0, kind: input, shape index: {}]
  %s1 = inlined_call_operand.vmem [shape: f32[2,75,16], index: 1, kind: input, shape index: {}]
  %s2 = inlined_call_operand.vmem [shape: f32[2,75,16], index: 2, kind: input, shape index: {}]
  %s3 = inlined_call_operand.vmem [shape: f32[48,32], index: 3, kind: input, shape index: {}]
  %s4 = inlined_call_operand.vmem [shape: f32[1,32], index: 4, kind: input, shape index: {}]
  %s5 = inlined_call_operand.vmem [shape: f32[96,32], index: 5, kind: input, shape index: {}]
  %s6 = inlined_call_operand.vmem [shape: f32[1,32], index: 6, kind: input, shape index: {}]
  %s7 = inlined_call_operand.vmem [shape: f32[2,75,32], index: 7, kind: output, shape index: {}]
  %s8 = sld [smem:[#allocation0]]
  $region109: #{tpu_custom_call.1} parent=0
    _
  %s10 = ssub.s32 1, %s8
  %s11 = scalar_select 0, %s10, %s8
  $region1: #{tpu_custom_call.1} parent=0
    #allocation2 [shape = 'u8[32768]{0}', space=vmem, size = 0x8000, scoped, tag = 'output window, operand 0']
    loop: start=0, step=1, limit=8
    $region2: #{tpu_custom_call.1} parent=1 // loop_pre_header
      _
    $region3: #{tpu_custom_call.1} parent=1 // loop_header
      %s13 = sphi 0, %s17
      %p14 = scmp.ge.s32.totalorder %s13, 8
      %s20 = sphi 0, %s32
      %s21 = sphi 0, %s28
      %s22 = sphi 0, %s20
      %s23 = sphi 0, %s21
      %s24 = sphi 0, %s22
      %s25 = sphi 0, %s23
      %s37 = sphi 0, %s39
      %s40 = sphi 0, %s37
      %s41 = sphi 0, %s40
      %s57 = sphi 0, %s41
      %s73 = sphi 0, %s75
      %s76 = sphi 0, %s73
      %s77 = sphi 0, %s76
      %s93 = sphi 0, %s77
      %s109 = sphi 0, %s111
      %s112 = sphi 0, %s109
      %s113 = sphi 0, %s112
      %s129 = sphi 0, %s113
      %s133 = sphi 0, %s133
      %s135 = sphi 0, %s133
      %s136 = sphi 0, %s135
      %s150 = sphi 0, %s136
      %s154 = sphi 0, %s154
      %s156 = sphi 0, %s154
      %s157 = sphi 0, %s156
      %s171 = sphi 0, %s157
      %s175 = sphi 0, %s175
      %s177 = sphi 0, %s175
      %s178 = sphi 0, %s177
      %s192 = sphi 0, %s178
      %s196 = sphi 0, %s196
      %s198 = sphi 0, %s196
      %s199 = sphi 0, %s198
      %s213 = sphi 0, %s199
      %s221 = sphi 0, %s223
      %s224 = sphi 0, %s221
      %s225 = sphi 0, %s224
      %s241 = sphi 0, %s225
    $region4: #{tpu_custom_call.1} parent=1 // loop_header_branch
      %16 = sbr.rel (%p14) target = $region8
    $region5: #{tpu_custom_call.1} parent=1 // loop_body
      %s18 = ssub.s32 %s13, 1
      %s19 = ssub.s32 %s13, 2
      %s26 = sadd.s32 1, %s21
      %p27 = scmp.ge.s32.totalorder %s26, 3
      %s28 = scalar_select %p27, 0, %s26
      %s29 = sadd.s32 1, %s20
      %s30 = scalar_select %p27, %s29, %s20
      %p31 = scmp.ge.s32.totalorder %s30, 2
      %s32 = scalar_select %p31, 0, %s30
      %s33 = ssub.s32 %s20, %s32
      %s34 = ssub.s32 %s21, %s28
      %s35 = sor.u32 %s33, %s34
      %p36 = scmp.eq.s32.totalorder %s35, 0
      %s38 = sadd.s32 %s37, 1
      %s39 = scalar_select %p36, %s37, %s38
      %p42 = pneg %p36
      %p43 = scmp.eq.s32.totalorder %s13, 5
      %p44 = por %p42, %p43
      %p45 = scmp.ne.s32.totalorder %s37, %s40
      %p46 = scmp.eq.s32.totalorder %s13, 0
      %p47 = por %p45, %p46
      %p48 = scmp.ne.s32.totalorder %s37, %s40
      %p49 = scmp.eq.s32.totalorder %s18, 5
      %p50 = por %p48, %p49
      %p51 = scmp.ne.s32.totalorder %s40, %s41
      %p52 = scmp.eq.s32.totalorder %s18, 0
      %p53 = por %p51, %p52
      %p54 = scmp.ne.s32.totalorder %s40, %s41
      %p55 = scmp.eq.s32.totalorder %s19, 5
      %p56 = por %p54, %p55
      %p58 = scmp.ne.s32.totalorder %s41, %s57
      %p59 = scmp.eq.s32.totalorder %s19, 0
      %p60 = por %p58, %p59
      %s61 = smul.u32 %s21, 4
      %s62 = ssub.s32 %s61, 1
      %p63 = scmp.gt.s32.totalorder %s62, 0
      %s64 = scalar_select %p63, %s62, 0
      %s65 = smul.u32 %s28, 4
      %s66 = ssub.s32 %s65, 1
      %p67 = scmp.gt.s32.totalorder %s66, 0
      %s68 = scalar_select %p67, %s66, 0
      %s69 = ssub.s32 %s20, %s32
      %s70 = ssub.s32 %s64, %s68
      %s71 = sor.u32 %s69, %s70
      %p72 = scmp.eq.s32.totalorder %s71, 0
      %s74 = sadd.s32 %s73, 1
      %s75 = scalar_select %p72, %s73, %s74
      %p78 = pneg %p72
      %p79 = scmp.eq.s32.totalorder %s13, 5
      %p80 = por %p78, %p79
      %p81 = scmp.ne.s32.totalorder %s73, %s76
      %p82 = scmp.eq.s32.totalorder %s13, 0
      %p83 = por %p81, %p82
      %p84 = scmp.ne.s32.totalorder %s73, %s76
      %p85 = scmp.eq.s32.totalorder %s18, 5
      %p86 = por %p84, %p85
      %p87 = scmp.ne.s32.totalorder %s76, %s77
      %p88 = scmp.eq.s32.totalorder %s18, 0
      %p89 = por %p87, %p88
      %p90 = scmp.ne.s32.totalorder %s76, %s77
      %p91 = scmp.eq.s32.totalorder %s19, 5
      %p92 = por %p90, %p91
      %p94 = scmp.ne.s32.totalorder %s77, %s93
      %p95 = scmp.eq.s32.totalorder %s19, 0
      %p96 = por %p94, %p95
      %s97 = sadd.s32 %s21, 1
      %s98 = smul.u32 %s97, 4
      %p99 = scmp.lt.s32.totalorder %s98, 9
      %s100 = scalar_select %p99, %s98, 9
      %s101 = sadd.s32 %s28, 1
      %s102 = smul.u32 %s101, 4
      %p103 = scmp.lt.s32.totalorder %s102, 9
      %s104 = scalar_select %p103, %s102, 9
      %s105 = ssub.s32 %s20, %s32
      %s106 = ssub.s32 %s100, %s104
      %s107 = sor.u32 %s105, %s106
      %p108 = scmp.eq.s32.totalorder %s107, 0
      %s110 = sadd.s32 %s109, 1
      %s111 = scalar_select %p108, %s109, %s110
      %p114 = pneg %p108
      %p115 = scmp.eq.s32.totalorder %s13, 5
      %p116 = por %p114, %p115
      %p117 = scmp.ne.s32.totalorder %s109, %s112
      %p118 = scmp.eq.s32.totalorder %s13, 0
      %p119 = por %p117, %p118
      %p120 = scmp.ne.s32.totalorder %s109, %s112
      %p121 = scmp.eq.s32.totalorder %s18, 5
      %p122 = por %p120, %p121
      %p123 = scmp.ne.s32.totalorder %s112, %s113
      %p124 = scmp.eq.s32.totalorder %s18, 0
      %p125 = por %p123, %p124
      %p126 = scmp.ne.s32.totalorder %s112, %s113
      %p127 = scmp.eq.s32.totalorder %s19, 5
      %p128 = por %p126, %p127
      %p130 = scmp.ne.s32.totalorder %s113, %s129
      %p131 = scmp.eq.s32.totalorder %s19, 0
      %p132 = por %p130, %p131
      %s134 = sadd.s32 %s133, 1
      %p137 = scmp.eq.s32.totalorder %s13, 5
      %p138 = scmp.ne.s32.totalorder %s133, %s135
      %p139 = scmp.eq.s32.totalorder %s13, 0
      %p140 = por %p138, %p139
      %p141 = scmp.ne.s32.totalorder %s133, %s135
      %p142 = scmp.eq.s32.totalorder %s18, 5
      %p143 = por %p141, %p142
      %p144 = scmp.ne.s32.totalorder %s135, %s136
      %p145 = scmp.eq.s32.totalorder %s18, 0
      %p146 = por %p144, %p145
      %p147 = scmp.ne.s32.totalorder %s135, %s136
      %p148 = scmp.eq.s32.totalorder %s19, 5
      %p149 = por %p147, %p148
      %p151 = scmp.ne.s32.totalorder %s136, %s150
      %p152 = scmp.eq.s32.totalorder %s19, 0
      %p153 = por %p151, %p152
      %s155 = sadd.s32 %s154, 1
      %p158 = scmp.eq.s32.totalorder %s13, 5
      %p159 = scmp.ne.s32.totalorder %s154, %s156
      %p160 = scmp.eq.s32.totalorder %s13, 0
      %p161 = por %p159, %p160
      %p162 = scmp.ne.s32.totalorder %s154, %s156
      %p163 = scmp.eq.s32.totalorder %s18, 5
      %p164 = por %p162, %p163
      %p165 = scmp.ne.s32.totalorder %s156, %s157
      %p166 = scmp.eq.s32.totalorder %s18, 0
      %p167 = por %p165, %p166
      %p168 = scmp.ne.s32.totalorder %s156, %s157
      %p169 = scmp.eq.s32.totalorder %s19, 5
      %p170 = por %p168, %p169
      %p172 = scmp.ne.s32.totalorder %s157, %s171
      %p173 = scmp.eq.s32.totalorder %s19, 0
      %p174 = por %p172, %p173
      %s176 = sadd.s32 %s175, 1
      %p179 = scmp.eq.s32.totalorder %s13, 5
      %p180 = scmp.ne.s32.totalorder %s175, %s177
      %p181 = scmp.eq.s32.totalorder %s13, 0
      %p182 = por %p180, %p181
      %p183 = scmp.ne.s32.totalorder %s175, %s177
      %p184 = scmp.eq.s32.totalorder %s18, 5
      %p185 = por %p183, %p184
      %p186 = scmp.ne.s32.totalorder %s177, %s178
      %p187 = scmp.eq.s32.totalorder %s18, 0
      %p188 = por %p186, %p187
      %p189 = scmp.ne.s32.totalorder %s177, %s178
      %p190 = scmp.eq.s32.totalorder %s19, 5
      %p191 = por %p189, %p190
      %p193 = scmp.ne.s32.totalorder %s178, %s192
      %p194 = scmp.eq.s32.totalorder %s19, 0
      %p195 = por %p193, %p194
      %s197 = sadd.s32 %s196, 1
      %p200 = scmp.eq.s32.totalorder %s13, 5
      %p201 = scmp.ne.s32.totalorder %s196, %s198
      %p202 = scmp.eq.s32.totalorder %s13, 0
      %p203 = por %p201, %p202
      %p204 = scmp.ne.s32.totalorder %s196, %s198
      %p205 = scmp.eq.s32.totalorder %s18, 5
      %p206 = por %p204, %p205
      %p207 = scmp.ne.s32.totalorder %s198, %s199
      %p208 = scmp.eq.s32.totalorder %s18, 0
      %p209 = por %p207, %p208
      %p210 = scmp.ne.s32.totalorder %s198, %s199
      %p211 = scmp.eq.s32.totalorder %s19, 5
      %p212 = por %p210, %p211
      %p214 = scmp.ne.s32.totalorder %s199, %s213
      %p215 = scmp.eq.s32.totalorder %s19, 0
      %p216 = por %p214, %p215
      %s217 = ssub.s32 %s20, %s32
      %s218 = ssub.s32 %s21, %s28
      %s219 = sor.u32 %s217, %s218
      %p220 = scmp.eq.s32.totalorder %s219, 0
      %s222 = sadd.s32 %s221, 1
      %s223 = scalar_select %p220, %s221, %s222
      %p226 = pneg %p220
      %p227 = scmp.eq.s32.totalorder %s13, 5
      %p228 = por %p226, %p227
      %p229 = scmp.ne.s32.totalorder %s221, %s224
      %p230 = scmp.eq.s32.totalorder %s13, 0
      %p231 = por %p229, %p230
      %p232 = scmp.ne.s32.totalorder %s221, %s224
      %p233 = scmp.eq.s32.totalorder %s18, 5
      %p234 = por %p232, %p233
      %p235 = scmp.ne.s32.totalorder %s224, %s225
      %p236 = scmp.eq.s32.totalorder %s18, 0
      %p237 = por %p235, %p236
      %p238 = scmp.ne.s32.totalorder %s224, %s225
      %p239 = scmp.eq.s32.totalorder %s19, 5
      %p240 = por %p238, %p239
      %p242 = scmp.ne.s32.totalorder %s225, %s241
      %p243 = scmp.eq.s32.totalorder %s19, 0
      %p244 = por %p242, %p243
      %p245 = scmp.le.s32.totalorder 1, %s13
      %p246 = scmp.lt.s32.totalorder %s13, 7
      %p247 = pnand %p245, %p246
      %p248 = pneg %p247
      // Predicated region
      $region9: #{tpu_custom_call.1} parent=5 // pred_check
        _
      $region10: #{tpu_custom_call.1} parent=5 // pred_check_branch
        %250 = sbr.rel (%p247) target = $region12
      $region11: #{tpu_custom_call.1} parent=5 // pred_region
        %s251 = ssub.s32 %s13, 1
        // Predicated region
        $region13: #{tpu_custom_call.1} parent=11 // pred_check
          %p252 = pneg %p146
        $region14: #{tpu_custom_call.1} parent=11 // pred_check_branch
          %254 = sbr.rel (%p252) target = $region16
        $region15: #{tpu_custom_call.1} parent=11 // pred_region
          _
        $region16: #{tpu_custom_call.1} parent=11 // pred_fallthru
          _
        // Predicated region
        $region17: #{tpu_custom_call.1} parent=11 // pred_check
          %p255 = pneg %p167
        $region18: #{tpu_custom_call.1} parent=11 // pred_check_branch
          %257 = sbr.rel (%p255) target = $region20
        $region19: #{tpu_custom_call.1} parent=11 // pred_region
          _
        $region20: #{tpu_custom_call.1} parent=11 // pred_fallthru
          _
        // Predicated region
        $region21: #{tpu_custom_call.1} parent=11 // pred_check
          %p258 = pneg %p188
        $region22: #{tpu_custom_call.1} parent=11 // pred_check_branch
          %260 = sbr.rel (%p258) target = $region24
        $region23: #{tpu_custom_call.1} parent=11 // pred_region
          _
        $region24: #{tpu_custom_call.1} parent=11 // pred_fallthru
          _
        // Predicated region
        $region25: #{tpu_custom_call.1} parent=11 // pred_check
          %p261 = pneg %p209
        $region26: #{tpu_custom_call.1} parent=11 // pred_check_branch
          %263 = sbr.rel (%p261) target = $region28
        $region27: #{tpu_custom_call.1} parent=11 // pred_region
          _
        $region28: #{tpu_custom_call.1} parent=11 // pred_fallthru
          _
      $region12: #{tpu_custom_call.1} parent=5 // pred_fallthru
        _
      %p264 = scmp.lt.s32.totalorder %s13, 6
      // Predicated region
      $region29: #{tpu_custom_call.1} parent=5 // pred_check
        %p265 = pneg %p264
      $region30: #{tpu_custom_call.1} parent=5 // pred_check_branch
        %267 = sbr.rel (%p265) target = $region32
      $region31: #{tpu_custom_call.1} parent=5 // pred_region
        // Predicated region
        $region33: #{tpu_custom_call.1} parent=31 // pred_check
          %p268 = pneg %p47
        $region34: #{tpu_custom_call.1} parent=31 // pred_check_branch
          %270 = sbr.rel (%p268) target = $region36
        $region35: #{tpu_custom_call.1} parent=31 // pred_region
          %s271 = smul.u32 4, %s21
          %s272 = ssub.s32 10, %s271
          %p273 = scmp.lt.s32.totalorder %s272, 4
          %s274 = scalar_select %p273, %s272, 4
          %s275 = smul.u32 128, %s274
          %p276 = scmp.lt.s32.totalorder %s20, 1
          %s277 = scalar_select %p276, %s20, 1
          %p278 = scmp.lt.s32.totalorder %s271, 9
          %s279 = scalar_select %p278, %s271, 9
          %s280 = smul.addr %s277, 10
          %s281 = sadd.s32 %s279, %s280
          %s282 = smul.addr %s281, 8
          %s283 = scalar_lea.vmem %s0, %s282
          %s284 = smul.u32 4, %s21
          %s285 = ssub.s32 10, %s284
          %p286 = scmp.lt.s32.totalorder %s285, 4
          %s287 = scalar_select %p286, %s285, 4
          %s288 = smul.u32 128, %s287
        $region36: #{tpu_custom_call.1} parent=31 // pred_fallthru
          _
        // Predicated region
        $region37: #{tpu_custom_call.1} parent=31 // pred_check
          %p289 = pneg %p83
        $region38: #{tpu_custom_call.1} parent=31 // pred_check_branch
          %291 = sbr.rel (%p289) target = $region40
        $region39: #{tpu_custom_call.1} parent=31 // pred_region
          %s292 = smul.u32 %s21, 4
          %s293 = ssub.s32 %s292, 1
          %p294 = scmp.gt.s32.totalorder %s293, 0
          %s295 = scalar_select %p294, %s293, 0
          %p296 = scmp.lt.s32.totalorder %s20, 1
          %s297 = scalar_select %p296, %s20, 1
          %p298 = scmp.lt.s32.totalorder %s295, 9
          %s299 = scalar_select %p298, %s295, 9
          %s300 = smul.addr %s297, 10
          %s301 = sadd.s32 %s299, %s300
          %s302 = smul.addr %s301, 8
          %s303 = scalar_lea.vmem %s1, %s302
          %s304 = smul.u32 %s21, 4
          %s305 = ssub.s32 %s304, 1
          %p306 = scmp.gt.s32.totalorder %s305, 0
          %s307 = scalar_select %p306, %s305, 0
        $region40: #{tpu_custom_call.1} parent=31 // pred_fallthru
          _
        // Predicated region
        $region41: #{tpu_custom_call.1} parent=31 // pred_check
          %p308 = pneg %p119
        $region42: #{tpu_custom_call.1} parent=31 // pred_check_branch
          %310 = sbr.rel (%p308) target = $region44
        $region43: #{tpu_custom_call.1} parent=31 // pred_region
          %s311 = sadd.s32 %s21, 1
          %s312 = smul.u32 %s311, 4
          %p313 = scmp.lt.s32.totalorder %s312, 9
          %s314 = scalar_select %p313, %s312, 9
          %p315 = scmp.lt.s32.totalorder %s20, 1
          %s316 = scalar_select %p315, %s20, 1
          %p317 = scmp.lt.s32.totalorder %s314, 9
          %s318 = scalar_select %p317, %s314, 9
          %s319 = smul.addr %s316, 10
          %s320 = sadd.s32 %s318, %s319
          %s321 = smul.addr %s320, 8
          %s322 = scalar_lea.vmem %s2, %s321
          %s323 = sadd.s32 %s21, 1
          %s324 = smul.u32 %s323, 4
          %p325 = scmp.lt.s32.totalorder %s324, 9
          %s326 = scalar_select %p325, %s324, 9
        $region44: #{tpu_custom_call.1} parent=31 // pred_fallthru
          _
      $region32: #{tpu_custom_call.1} parent=5 // pred_fallthru
        _
      %p327 = scmp.le.s32.totalorder 1, %s13
      %p328 = scmp.lt.s32.totalorder %s13, 7
      %p329 = pnand %p327, %p328
      %p330 = pneg %p329
      // Predicated region
      $region45: #{tpu_custom_call.1} parent=5 // pred_check
        _
      $region46: #{tpu_custom_call.1} parent=5 // pred_check_branch
        %332 = sbr.rel (%p329) target = $region48
      $region47: #{tpu_custom_call.1} parent=5 // pred_region
        %s333 = ssub.s32 %s13, 1
        %s334 = smul.u32 4, %s23
        %s335 = ssub.s32 10, %s334
        %p336 = scmp.lt.s32.totalorder %s335, 4
        %s337 = scalar_select %p336, %s335, 4
        %s338 = smul.u32 128, %s337
        %p339 = scmp.lt.s32.totalorder %s22, 1
        %s340 = scalar_select %p339, %s22, 1
        %p341 = scmp.lt.s32.totalorder %s334, 9
        %s342 = scalar_select %p341, %s334, 9
        %s343 = smul.addr %s340, 10
        %s344 = sadd.s32 %s342, %s343
        %s345 = smul.addr %s344, 8
        %s346 = scalar_lea.vmem %s0, %s345
        %p347 = pneg %p53
        %p348 = pneg %p50
        %s349 = smul.u32 %s23, 4
        %s350 = ssub.s32 %s349, 1
        %p351 = scmp.gt.s32.totalorder %s350, 0
        %s352 = scalar_select %p351, %s350, 0
        %p353 = scmp.lt.s32.totalorder %s22, 1
        %s354 = scalar_select %p353, %s22, 1
        %p355 = scmp.lt.s32.totalorder %s352, 9
        %s356 = scalar_select %p355, %s352, 9
        %s357 = smul.addr %s354, 10
        %s358 = sadd.s32 %s356, %s357
        %s359 = smul.addr %s358, 8
        %s360 = scalar_lea.vmem %s1, %s359
        %p361 = pneg %p89
        %p362 = pneg %p86
        %s363 = sadd.s32 %s23, 1
        %s364 = smul.u32 %s363, 4
        %p365 = scmp.lt.s32.totalorder %s364, 9
        %s366 = scalar_select %p365, %s364, 9
        %p367 = scmp.lt.s32.totalorder %s22, 1
        %s368 = scalar_select %p367, %s22, 1
        %p369 = scmp.lt.s32.totalorder %s366, 9
        %s370 = scalar_select %p369, %s366, 9
        %s371 = smul.addr %s368, 10
        %s372 = sadd.s32 %s370, %s371
        %s373 = smul.addr %s372, 8
        %s374 = scalar_lea.vmem %s2, %s373
        %p375 = pneg %p125
        %p376 = pneg %p122
        %p377 = pneg %p146
        %p378 = pneg %p143
        %p379 = pneg %p167
        %p380 = pneg %p164
        %p381 = pneg %p188
        %p382 = pneg %p185
        %p383 = pneg %p209
        %p384 = pneg %p206
        %p385 = pneg %p237
        %p386 = pneg %p234
        %s387 = sand.u32 %s224, 1
        %s388 = sand.u32 %s224, 1
        %s389 = smul.addr %s388, 32
        %s390 = scalar_lea.vmem [#allocation2], %s389
        %s391 = smul.u32 4, %s23
        %s392 = ssub.s32 10, %s391
        %p393 = scmp.lt.s32.totalorder %s392, 4
        %s394 = scalar_select %p393, %s392, 4
        %s395 = smul.u32 128, %s394
        %p396 = scmp.lt.s32.totalorder %s22, 1
        %s397 = scalar_select %p396, %s22, 1
        %p398 = scmp.lt.s32.totalorder %s391, 9
        %s399 = scalar_select %p398, %s391, 9
        %s400 = smul.addr %s397, 10
        %s401 = sadd.s32 %s399, %s400
        %s402 = smul.addr %s401, 8
        %s403 = scalar_lea.vmem %s0, %s402
        %s404 = smul.u32 4, %s23
        %s405 = ssub.s32 10, %s404
        %p406 = scmp.lt.s32.totalorder %s405, 4
        %s407 = scalar_select %p406, %s405, 4
        %s408 = smul.u32 128, %s407
        %s409 = smul.u32 %s23, 4
        %s410 = ssub.s32 %s409, 1
        %p411 = scmp.gt.s32.totalorder %s410, 0
        %s412 = scalar_select %p411, %s410, 0
        %p413 = scmp.lt.s32.totalorder %s22, 1
        %s414 = scalar_select %p413, %s22, 1
        %p415 = scmp.lt.s32.totalorder %s412, 9
        %s416 = scalar_select %p415, %s412, 9
        %s417 = smul.addr %s414, 10
        %s418 = sadd.s32 %s416, %s417
        %s419 = smul.addr %s418, 8
        %s420 = scalar_lea.vmem %s1, %s419
        %s421 = smul.u32 %s23, 4
        %s422 = ssub.s32 %s421, 1
        %p423 = scmp.gt.s32.totalorder %s422, 0
        %s424 = scalar_select %p423, %s422, 0
        %s425 = sadd.s32 %s23, 1
        %s426 = smul.u32 %s425, 4
        %p427 = scmp.lt.s32.totalorder %s426, 9
        %s428 = scalar_select %p427, %s426, 9
        %p429 = scmp.lt.s32.totalorder %s22, 1
        %s430 = scalar_select %p429, %s22, 1
        %p431 = scmp.lt.s32.totalorder %s428, 9
        %s432 = scalar_select %p431, %s428, 9
        %s433 = smul.addr %s430, 10
        %s434 = sadd.s32 %s432, %s433
        %s435 = smul.addr %s434, 8
        %s436 = scalar_lea.vmem %s2, %s435
        %s437 = sadd.s32 %s23, 1
        %s438 = smul.u32 %s437, 4
        %p439 = scmp.lt.s32.totalorder %s438, 9
        %s440 = scalar_select %p439, %s438, 9
        %s441 = smul.u32 4, %s23
        %s442 = ssub.s32 10, %s441
        %p443 = scmp.lt.s32.totalorder %s442, 4
        %s444 = scalar_select %p443, %s442, 4
        %s445 = smul.u32 128, %s444
        %s446 = smul.u32 %s23, 32
        %v447 = vlaneseq
        %v448 = vshrl.u32 %v447, 7
        %v449 = vadd.s32 %v448, 8
        %v450 = vadd.s32 %v448, 16
        %v451 = vadd.s32 %v448, 24
        %v452 = vld [vmem:[%s403] sm:$0xff]
        %v453 = vld [vmem:[%s403 + $0x8] sm:$0xff]
        %v454 = vld [vmem:[%s403 + $0x10] sm:$0xff]
        %v455 = vld [vmem:[%s403 + $0x18] sm:$0xff]
        %v456 = vstv %s446
        %v457 = vadd.s32 %v456, %v448
        %v458 = vadd.s32 %v456, %v449
        %v459 = vadd.s32 %v456, %v450
        %v460 = vadd.s32 %v456, %v451
        %vm461 = vcmp.lt.s32.totalorder %v457, 75
        %vm462 = vcmp.lt.s32.totalorder %v458, 75
        %vm463 = vcmp.lt.s32.totalorder %v459, 75
        %vm464 = vcmp.lt.s32.totalorder %v460, 75
        %v465 = vsel %vm461, 1, 0
        %v466 = vsel %vm462, 1, 0
        %v467 = vsel %vm463, 1, 0
        %v468 = vsel %vm464, 1, 0
        %vm469 = vcmp.eq.s32.totalorder %v465, 1
        %vm470 = vcmp.eq.s32.totalorder %v466, 1
        %vm471 = vcmp.eq.s32.totalorder %v467, 1
        %vm472 = vcmp.eq.s32.totalorder %v468, 1
        %v473 = vsel %vm469, %v452, 0.0
        %v474 = vsel %vm470, %v453, 0.0
        %v475 = vsel %vm471, %v454, 0.0
        %v476 = vsel %vm472, %v455, 0.0
        %v477 = vld [vmem:[%s420] sm:$0xff]
        %v478 = vld [vmem:[%s436] sm:$0xff]
        %p479 = scmp.gt.s32.totalorder %s23, 0
        %s480 = sadd.s32 %s446, 32
        %p481 = scmp.lt.s32.totalorder %s480, 75
        %s482 = sadd.s32 %s446, 33
        %p483 = scmp.lt.s32.totalorder %s482, 75
        %s484 = scalar_select %p479, 1, 0
        %v485 = vstv %s484
        %vm486 = vcmp.eq.s32.totalorder %v485, 1
        %v487 = vsel %vm486, %v477, 0.0
        %s488 = scalar_select %p481, 1, 0
        %v489 = vstv %s488
        %vm490 = vcmp.eq.s32.totalorder %v489, 1
        %v491 = vsel %vm490, %v478, 0.0
        %s492 = scalar_select %p483, 1, 0
        %v493 = vstv %s492
        %vm494 = vcmp.eq.s32.totalorder %v493, 1
        %v495 = vsel %vm494, %v478, 0.0
        %v496 = vld [vmem:[%s3] sm:$0xff]
        %v497 = vld [vmem:[%s3 + $0x8] sm:$0xff]
        %v498 = vld [vmem:[%s3 + $0x10] sm:$0xff]
        %v499 = vld [vmem:[%s3 + $0x18] sm:$0xff]
        %v500 = vld [vmem:[%s3 + $0x20] sm:$0xff]
        %v501 = vld [vmem:[%s3 + $0x28] sm:$0xff]
        %v502 = vld [vmem:[%s5] sm:$0xff]
        %v503 = vld [vmem:[%s5 + $0x8] sm:$0xff]
        %v504 = vld [vmem:[%s5 + $0x10] sm:$0xff]
        %v505 = vld [vmem:[%s5 + $0x18] sm:$0xff]
        %v506 = vld [vmem:[%s5 + $0x20] sm:$0xff]
        %v507 = vld [vmem:[%s5 + $0x28] sm:$0xff]
        %v508 = vld [vmem:[%s5 + $0x30] sm:$0xff]
        %v509 = vld [vmem:[%s5 + $0x38] sm:$0xff]
        %v510 = vld [vmem:[%s5 + $0x40] sm:$0xff]
        %v511 = vld [vmem:[%s5 + $0x48] sm:$0xff]
        %v512 = vld [vmem:[%s5 + $0x50] sm:$0xff]
        %v513 = vld [vmem:[%s5 + $0x58] sm:$0xff]
        %v514 = vld [vmem:[%s4] sm:$0x1]
        %v515 = vld [vmem:[%s6] sm:$0x1]
        %vm516 = vcmp.eq.s32.totalorder %v448, 0
        %vm517 = vcmp.eq.s32.totalorder %v449, 0
        %vm518 = vcmp.eq.s32.totalorder %v450, 0
        %vm519 = vcmp.eq.s32.totalorder %v451, 0
        %v520 = vrot.slane %v473, 7
        %v521 = vrot.slane %v474, 7
        %v522 = vrot.slane %v475, 7
        %v523 = vrot.slane %v476, 7
        %vm524 = vcmp.lt.s32.totalorder %v448, 1
        %v525 = vsel %vm524, %v522, %v523
        %v526 = vsel %vm524, %v521, %v522
        %v527 = vsel %vm524, %v520, %v521
        %v528 = vsel %vm524, %v523, %v520
        %v529 = vsel %vm516, 1, 0
        %v530 = vsel %vm517, 1, 0
        %v531 = vsel %vm518, 1, 0
        %v532 = vsel %vm519, 1, 0
        %vm533 = vcmp.eq.s32.totalorder %v529, 1
        %vm534 = vcmp.eq.s32.totalorder %v530, 1
        %vm535 = vcmp.eq.s32.totalorder %v531, 1
        %vm536 = vcmp.eq.s32.totalorder %v532, 1
        %v537 = vlaneseq
        %v538 = vshrl.u32 %v537, 7
        %v539 = vsub.s32 7, %v538
        %v540 = vrot.slane %v487, %v539
        %v541 = vsel %vm533, %v540, %v528
        %v542 = vsel %vm534, %v540, %v527
        %v543 = vsel %vm535, %v540, %v526
        %v544 = vsel %vm536, %v540, %v525
        %vm545 = vcmp.eq.s32.totalorder %v448, 31
        %vm546 = vcmp.eq.s32.totalorder %v449, 31
        %vm547 = vcmp.eq.s32.totalorder %v450, 31
        %vm548 = vcmp.eq.s32.totalorder %v451, 31
        %v549 = vrot.slane %v473, 1
        %v550 = vrot.slane %v474, 1
        %v551 = vrot.slane %v475, 1
        %v552 = vrot.slane %v476, 1
        %vm553 = vcmp.lt.s32.totalorder %v448, 7
        %v554 = vsel %vm553, %v551, %v552
        %v555 = vsel %vm553, %v550, %v551
        %v556 = vsel %vm553, %v549, %v550
        %v557 = vsel %vm553, %v552, %v549
        %v558 = vsel %vm545, 1, 0
        %v559 = vsel %vm546, 1, 0
        %v560 = vsel %vm547, 1, 0
        %v561 = vsel %vm548, 1, 0
        %vm562 = vcmp.eq.s32.totalorder %v558, 1
        %vm563 = vcmp.eq.s32.totalorder %v559, 1
        %vm564 = vcmp.eq.s32.totalorder %v560, 1
        %vm565 = vcmp.eq.s32.totalorder %v561, 1
        %v566 = vlaneseq
        %v567 = vshrl.u32 %v566, 7
        %v568 = vsub.s32 0, %v567
        %v569 = vrot.slane %v491, %v568
        %v570 = vsel %vm562, %v569, %v556
        %v571 = vsel %vm563, %v569, %v555
        %v572 = vsel %vm564, %v569, %v554
        %v573 = vsel %vm565, %v569, %v557
        %578 = vrot.lane.b32.xlu0 %v473, 16
        %v579 = vpop.permute.xlu0 %578
        %580 = vrot.lane.b32.xlu0 %v474, 16
        %v581 = vpop.permute.xlu0 %580
        %582 = vrot.lane.b32.xlu0 %v475, 16
        %v583 = vpop.permute.xlu0 %582
        %584 = vrot.lane.b32.xlu0 %v476, 16
        %v585 = vpop.permute.xlu0 %584
        %594 = vrot.lane.b32.xlu0 %v570, 32
        %v595 = vpop.permute.xlu0 %594
        %596 = vrot.lane.b32.xlu0 %v571, 32
        %v597 = vpop.permute.xlu0 %596
        %598 = vrot.lane.b32.xlu0 %v572, 32
        %v599 = vpop.permute.xlu0 %598
        %600 = vrot.lane.b32.xlu0 %v573, 32
        %v601 = vpop.permute.xlu0 %600
        %vm606 = vcmask 130048
        %v607 = vsel %vm606, %v541, %v579
        %v608 = vsel %vm606, %v542, %v581
        %v609 = vsel %vm606, %v543, %v583
        %v610 = vsel %vm606, %v544, %v585
        %vm611 = vcmask 261120
        %v612 = vsel %vm611, %v607, %v595
        %v613 = vsel %vm611, %v608, %v597
        %v614 = vsel %vm611, %v609, %v599
        %v615 = vsel %vm611, %v610, %v601
        %v617 = vlaneseq
        %v618 = vshrl.u32 %v617, 7
        %v619 = vsub.s32 0, %v618
        %v620 = vrot.slane %v514, %v619
        %vm622 = vcmask 392192
        %v624 = vsel %vm622, %v612, 0
        %v627 = vsel %vm622, %v613, 0
        %v630 = vsel %vm622, %v614, 0
        %v633 = vsel %vm622, %v615, 0
        %635 = vmatprep.subr.mxu0 0.0
        %636 = vmatpush1.msra.mxu0 %v496
        %637 = vmatprep.subr.mxu0 0.0
        %638 = vmatpush1.msra.mxu0 %v497
        %639 = vmatprep.subr.mxu0 0.0
        %640 = vmatpush1.msra.mxu0 %v498
        %641 = vmatprep.subr.mxu0 0.0
        %642 = vmatpush1.msra.mxu0 %v499
        %643 = vmatprep.subr.mxu0 0.0
        %644 = vmatpush1.msra.mxu0 %v500
        %645 = vmatprep.subr.mxu0 0.0
        %646 = vmatpush1.msra.mxu0 %v501
        %647 = vmatprep.subr.mxu0 0.0
        %648 = vmatpush1.msra.mxu0 0.0
        %649 = vmatprep.subr.mxu0 0.0
        %650 = vmatpush1.msra.mxu0 0.0
        %651 = vmatprep.subr.mxu0 0.0
        %652 = vmatpush1.msra.mxu0 0.0
        %653 = vmatprep.subr.mxu0 0.0
        %654 = vmatpush1.msra.mxu0 0.0
        %655 = vmatprep.subr.mxu0 0.0
        %656 = vmatpush1.msra.mxu0 0.0
        %657 = vmatprep.subr.mxu0 0.0
        %658 = vmatpush1.msra.mxu0 0.0
        %659 = vmatprep.subr.mxu0 0.0
        %660 = vmatpush1.msra.mxu0 0.0
        %661 = vmatprep.subr.mxu0 0.0
        %662 = vmatpush1.msra.mxu0 0.0
        %663 = vmatprep.subr.mxu0 0.0
        %664 = vmatpush1.msra.mxu0 0.0
        %665 = vmatprep.subr.mxu0 0.0
        %666 = vmatpush1.msra.mxu0 0.0
        %667 = vmatprep.subr.mxu0 0.0
        %668 = vmatpush1.msra.mxu0 0.0
        %669 = vmatprep.subr.mxu0 0.0
        %670 = vmatpush1.msra.mxu0 0.0
        %671 = vmatprep.subr.mxu0 0.0
        %672 = vmatpush1.msra.mxu0 0.0
        %673 = vmatprep.subr.mxu0 0.0
        %674 = vmatpush1.msra.mxu0 0.0
        %675 = vmatprep.subr.mxu0 0.0
        %676 = vmatpush1.msra.mxu0 0.0
        %677 = vmatprep.subr.mxu0 0.0
        %678 = vmatpush1.msra.mxu0 0.0
        %679 = vmatprep.subr.mxu0 0.0
        %680 = vmatpush1.msra.mxu0 0.0
        %681 = vmatprep.subr.mxu0 0.0
        %682 = vmatpush1.msra.mxu0 0.0
        %683 = vmatprep.subr.mxu0 0.0
        %684 = vmatpush1.msra.mxu0 0.0
        %685 = vmatprep.subr.mxu0 0.0
        %686 = vmatpush1.msra.mxu0 0.0
        %687 = vmatprep.subr.mxu0 0.0
        %688 = vmatpush1.msra.mxu0 0.0
        %689 = vmatprep.subr.mxu0 0.0
        %690 = vmatpush1.msra.mxu0 0.0
        %691 = vmatprep.subr.mxu0 0.0
        %692 = vmatpush1.msra.mxu0 0.0
        %693 = vmatprep.subr.mxu0 0.0
        %694 = vmatpush1.msra.mxu0 0.0
        %695 = vmatprep.subr.mxu0 0.0
        %696 = vmatpush1.msra.mxu0 0.0
        %697 = vmatprep.subr.mxu0 0.0
        %698 = vmatpush1.msra.mxu0 0.0
        %699 = vmatprep.mubr.f32.mxu0 0.0
        %700 = vmatmul.mubr.f32.gmra.mrb[0].mxu0 %v624
        %v701 = vpop.f32.mrb[0].mxu0
        %v702 = vadd.f32 %v620, %v701
        %v703 = vpop.f32.mrb[0].mxu0
        %704 = vmatprep.mubr.f32.mxu0 0.0
        %705 = vmatmul.mubr.f32.gmra.mrb[0].mxu0 %v627
        %v706 = vpop.f32.mrb[0].mxu0
        %v707 = vadd.f32 %v620, %v706
        %v708 = vpop.f32.mrb[0].mxu0
        %709 = vmatprep.mubr.f32.mxu0 0.0
        %710 = vmatmul.mubr.f32.gmra.mrb[0].mxu0 %v630
        %v711 = vpop.f32.mrb[0].mxu0
        %v712 = vadd.f32 %v620, %v711
        %v713 = vpop.f32.mrb[0].mxu0
        %714 = vmatprep.mubr.f32.mxu0 0.0
        %715 = vmatmul.mubr.f32.gmra.mrb[0].mxu0 %v633
        %v716 = vpop.f32.mrb[0].mxu0
        %v717 = vadd.f32 %v620, %v716
        %v718 = vpop.f32.mrb[0].mxu0
        %719 = vdwg.mxu0
        %vm720 = vcmp.gt.f32.partialorder %v702, 0.0
        %vm721 = vcmp.gt.f32.partialorder %v707, 0.0
        %vm722 = vcmp.gt.f32.partialorder %v712, 0.0
        %vm723 = vcmp.gt.f32.partialorder %v717, 0.0
        %v724 = vmul.f32 %v702, 0.2
        %v725 = vmul.f32 %v707, 0.2
        %v726 = vmul.f32 %v712, 0.2
        %v727 = vmul.f32 %v717, 0.2
        %v728 = vsel %vm720, %v702, %v724
        %v729 = vsel %vm721, %v707, %v725
        %v730 = vsel %vm722, %v712, %v726
        %v731 = vsel %vm723, %v717, %v727
        %v732 = vsel %vm469, %v728, 0.0
        %v733 = vsel %vm470, %v729, 0.0
        %v734 = vsel %vm471, %v730, 0.0
        %v735 = vsel %vm472, %v731, 0.0
        %v737 = vrot.slane %v487, 1
        %738 = vrot.lane.b32.xlu0 %v737, 16
        %v739 = vpop.permute.xlu0 %738
        %v741 = vrot.slane %v473, 2
        %742 = vrot.lane.b32.xlu0 %v741, 32
        %v743 = vpop.permute.xlu0 %742
        %v745 = vsel %vm606, %v487, %v739
        %v746 = vsel %vm611, %v745, %v743
        %v748 = vrot.slane %v746, 6
        %v749 = vsel %vm622, %v748, 0
        %751 = vmatprep.subr.mxu0 0.0
        %752 = vmatpush1.msra.mxu0 %v496
        %753 = vmatprep.subr.mxu0 0.0
        %754 = vmatpush1.msra.mxu0 %v497
        %755 = vmatprep.subr.mxu0 0.0
        %756 = vmatpush1.msra.mxu0 %v498
        %757 = vmatprep.subr.mxu0 0.0
        %758 = vmatpush1.msra.mxu0 %v499
        %759 = vmatprep.subr.mxu0 0.0
        %760 = vmatpush1.msra.mxu0 %v500
        %761 = vmatprep.subr.mxu0 0.0
        %762 = vmatpush1.msra.mxu0 %v501
        %763 = vmatprep.subr.mxu0 0.0
        %764 = vmatpush1.msra.mxu0 0.0
        %765 = vmatprep.subr.mxu0 0.0
        %766 = vmatpush1.msra.mxu0 0.0
        %767 = vmatprep.subr.mxu0 0.0
        %768 = vmatpush1.msra.mxu0 0.0
        %769 = vmatprep.subr.mxu0 0.0
        %770 = vmatpush1.msra.mxu0 0.0
        %771 = vmatprep.subr.mxu0 0.0
        %772 = vmatpush1.msra.mxu0 0.0
        %773 = vmatprep.subr.mxu0 0.0
        %774 = vmatpush1.msra.mxu0 0.0
        %775 = vmatprep.subr.mxu0 0.0
        %776 = vmatpush1.msra.mxu0 0.0
        %777 = vmatprep.subr.mxu0 0.0
        %778 = vmatpush1.msra.mxu0 0.0
        %779 = vmatprep.subr.mxu0 0.0
        %780 = vmatpush1.msra.mxu0 0.0
        %781 = vmatprep.subr.mxu0 0.0
        %782 = vmatpush1.msra.mxu0 0.0
        %783 = vmatprep.subr.mxu0 0.0
        %784 = vmatpush1.msra.mxu0 0.0
        %785 = vmatprep.subr.mxu0 0.0
        %786 = vmatpush1.msra.mxu0 0.0
        %787 = vmatprep.subr.mxu0 0.0
        %788 = vmatpush1.msra.mxu0 0.0
        %789 = vmatprep.subr.mxu0 0.0
        %790 = vmatpush1.msra.mxu0 0.0
        %791 = vmatprep.subr.mxu0 0.0
        %792 = vmatpush1.msra.mxu0 0.0
        %793 = vmatprep.subr.mxu0 0.0
        %794 = vmatpush1.msra.mxu0 0.0
        %795 = vmatprep.subr.mxu0 0.0
        %796 = vmatpush1.msra.mxu0 0.0
        %797 = vmatprep.subr.mxu0 0.0
        %798 = vmatpush1.msra.mxu0 0.0
        %799 = vmatprep.subr.mxu0 0.0
        %800 = vmatpush1.msra.mxu0 0.0
        %801 = vmatprep.subr.mxu0 0.0
        %802 = vmatpush1.msra.mxu0 0.0
        %803 = vmatprep.subr.mxu0 0.0
        %804 = vmatpush1.msra.mxu0 0.0
        %805 = vmatprep.subr.mxu0 0.0
        %806 = vmatpush1.msra.mxu0 0.0
        %807 = vmatprep.subr.mxu0 0.0
        %808 = vmatpush1.msra.mxu0 0.0
        %809 = vmatprep.subr.mxu0 0.0
        %810 = vmatpush1.msra.mxu0 0.0
        %811 = vmatprep.subr.mxu0 0.0
        %812 = vmatpush1.msra.mxu0 0.0
        %813 = vmatprep.subr.mxu0 0.0
        %814 = vmatpush1.msra.mxu0 0.0
        %815 = vmatprep.mubr.f32.mxu0 0.0
        %816 = vmatmul.mubr.f32.gmra.mrb[0].mxu0 %v749
        %v817 = vpop.f32.mrb[0].mxu0
        %v818 = vadd.f32 %v514, %v817
        %v819 = vpop.f32.mrb[0].mxu0
        %820 = vdwg.mxu0
        %vm821 = vcmp.gt.f32.partialorder %v818, 0.0
        %v822 = vmul.f32 %v818, 0.2
        %v823 = vsel %vm821, %v818, %v822
        %v824 = vsel %vm486, %v823, 0.0
        %v826 = vrot.slane %v491, 1
        %827 = vrot.lane.b32.xlu0 %v826, 16
        %v828 = vpop.permute.xlu0 %827
        %v831 = vrot.slane %v495, 2
        %832 = vrot.lane.b32.xlu0 %v831, 32
        %v833 = vpop.permute.xlu0 %832
        %v835 = vsel %vm606, %v476, %v828
        %v836 = vsel %vm611, %v835, %v833
        %v838 = vrot.slane %v836, 7
        %v839 = vsel %vm622, %v838, 0
        %841 = vmatprep.subr.mxu0 0.0
        %842 = vmatpush1.msra.mxu0 %v496
        %843 = vmatprep.subr.mxu0 0.0
        %844 = vmatpush1.msra.mxu0 %v497
        %845 = vmatprep.subr.mxu0 0.0
        %846 = vmatpush1.msra.mxu0 %v498
        %847 = vmatprep.subr.mxu0 0.0
        %848 = vmatpush1.msra.mxu0 %v499
        %849 = vmatprep.subr.mxu0 0.0
        %850 = vmatpush1.msra.mxu0 %v500
        %851 = vmatprep.subr.mxu0 0.0
        %852 = vmatpush1.msra.mxu0 %v501
        %853 = vmatprep.subr.mxu0 0.0
        %854 = vmatpush1.msra.mxu0 0.0
        %855 = vmatprep.subr.mxu0 0.0
        %856 = vmatpush1.msra.mxu0 0.0
        %857 = vmatprep.subr.mxu0 0.0
        %858 = vmatpush1.msra.mxu0 0.0
        %859 = vmatprep.subr.mxu0 0.0
        %860 = vmatpush1.msra.mxu0 0.0
        %861 = vmatprep.subr.mxu0 0.0
        %862 = vmatpush1.msra.mxu0 0.0
        %863 = vmatprep.subr.mxu0 0.0
        %864 = vmatpush1.msra.mxu0 0.0
        %865 = vmatprep.subr.mxu0 0.0
        %866 = vmatpush1.msra.mxu0 0.0
        %867 = vmatprep.subr.mxu0 0.0
        %868 = vmatpush1.msra.mxu0 0.0
        %869 = vmatprep.subr.mxu0 0.0
        %870 = vmatpush1.msra.mxu0 0.0
        %871 = vmatprep.subr.mxu0 0.0
        %872 = vmatpush1.msra.mxu0 0.0
        %873 = vmatprep.subr.mxu0 0.0
        %874 = vmatpush1.msra.mxu0 0.0
        %875 = vmatprep.subr.mxu0 0.0
        %876 = vmatpush1.msra.mxu0 0.0
        %877 = vmatprep.subr.mxu0 0.0
        %878 = vmatpush1.msra.mxu0 0.0
        %879 = vmatprep.subr.mxu0 0.0
        %880 = vmatpush1.msra.mxu0 0.0
        %881 = vmatprep.subr.mxu0 0.0
        %882 = vmatpush1.msra.mxu0 0.0
        %883 = vmatprep.subr.mxu0 0.0
        %884 = vmatpush1.msra.mxu0 0.0
        %885 = vmatprep.subr.mxu0 0.0
        %886 = vmatpush1.msra.mxu0 0.0
        %887 = vmatprep.subr.mxu0 0.0
        %888 = vmatpush1.msra.mxu0 0.0
        %889 = vmatprep.subr.mxu0 0.0
        %890 = vmatpush1.msra.mxu0 0.0
        %891 = vmatprep.subr.mxu0 0.0
        %892 = vmatpush1.msra.mxu0 0.0
        %893 = vmatprep.subr.mxu0 0.0
        %894 = vmatpush1.msra.mxu0 0.0
        %895 = vmatprep.subr.mxu0 0.0
        %896 = vmatpush1.msra.mxu0 0.0
        %897 = vmatprep.subr.mxu0 0.0
        %898 = vmatpush1.msra.mxu0 0.0
        %899 = vmatprep.subr.mxu0 0.0
        %900 = vmatpush1.msra.mxu0 0.0
        %901 = vmatprep.subr.mxu0 0.0
        %902 = vmatpush1.msra.mxu0 0.0
        %903 = vmatprep.subr.mxu0 0.0
        %904 = vmatpush1.msra.mxu0 0.0
        %905 = vmatprep.mubr.f32.mxu0 0.0
        %906 = vmatmul.mubr.f32.gmra.mrb[0].mxu0 %v839
        %v907 = vpop.f32.mrb[0].mxu0
        %v908 = vadd.f32 %v514, %v907
        %v909 = vpop.f32.mrb[0].mxu0
        %910 = vdwg.mxu0
        %vm911 = vcmp.gt.f32.partialorder %v908, 0.0
        %v912 = vmul.f32 %v908, 0.2
        %v913 = vsel %vm911, %v908, %v912
        %v914 = vsel %vm490, %v913, 0.0
        %v915 = vrot.slane %v732, 7
        %v916 = vrot.slane %v733, 7
        %v917 = vrot.slane %v734, 7
        %v918 = vrot.slane %v735, 7
        %v919 = vsel %vm524, %v917, %v918
        %v920 = vsel %vm524, %v916, %v917
        %v921 = vsel %vm524, %v915, %v916
        %v922 = vsel %vm524, %v918, %v915
        %v923 = vlaneseq
        %v924 = vshrl.u32 %v923, 7
        %v925 = vsub.s32 0, %v924
        %v926 = vrot.slane %v824, %v925
        %v927 = vsel %vm533, %v926, %v922
        %v928 = vsel %vm534, %v926, %v921
        %v929 = vsel %vm535, %v926, %v920
        %v930 = vsel %vm536, %v926, %v919
        %v931 = vrot.slane %v732, 1
        %v932 = vrot.slane %v733, 1
        %v933 = vrot.slane %v734, 1
        %v934 = vrot.slane %v735, 1
        %v935 = vsel %vm553, %v933, %v934
        %v936 = vsel %vm553, %v932, %v933
        %v937 = vsel %vm553, %v931, %v932
        %v938 = vsel %vm553, %v934, %v931
        %v939 = vlaneseq
        %v940 = vshrl.u32 %v939, 7
        %v941 = vsub.s32 0, %v940
        %v942 = vrot.slane %v914, %v941
        %v943 = vsel %vm562, %v942, %v937
        %v944 = vsel %vm563, %v942, %v936
        %v945 = vsel %vm564, %v942, %v935
        %v946 = vsel %vm565, %v942, %v938
        %951 = vrot.lane.b32.xlu0 %v732, 32
        %v952 = vpop.permute.xlu0 %951
        %953 = vrot.lane.b32.xlu0 %v733, 32
        %v954 = vpop.permute.xlu0 %953
        %955 = vrot.lane.b32.xlu0 %v734, 32
        %v956 = vpop.permute.xlu0 %955
        %957 = vrot.lane.b32.xlu0 %v735, 32
        %v958 = vpop.permute.xlu0 %957
        %967 = vrot.lane.b32.xlu0 %v943, 64
        %v968 = vpop.permute.xlu0 %967
        %969 = vrot.lane.b32.xlu0 %v944, 64
        %v970 = vpop.permute.xlu0 %969
        %971 = vrot.lane.b32.xlu0 %v945, 64
        %v972 = vpop.permute.xlu0 %971
        %973 = vrot.lane.b32.xlu0 %v946, 64
        %v974 = vpop.permute.xlu0 %973
        %v979 = vsel %vm611, %v927, %v952
        %v980 = vsel %vm611, %v928, %v954
        %v981 = vsel %vm611, %v929, %v956
        %v982 = vsel %vm611, %v930, %v958
        %vm983 = vcmask 523264
        %v984 = vsel %vm983, %v979, %v968
        %v985 = vsel %vm983, %v980, %v970
        %v986 = vsel %vm983, %v981, %v972
        %v987 = vsel %vm983, %v982, %v974
        %v989 = vlaneseq
        %v990 = vshrl.u32 %v989, 7
        %v991 = vsub.s32 0, %v990
        %v992 = vrot.slane %v515, %v991
        %vm994 = vcmask 785408
        %v996 = vsel %vm994, %v984, 0
        %v999 = vsel %vm994, %v985, 0
        %v1002 = vsel %vm994, %v986, 0
        %v1005 = vsel %vm994, %v987, 0
        %1007 = vmatprep.subr.mxu0 0.0
        %1008 = vmatpush1.msra.mxu0 %v502
        %1009 = vmatprep.subr.mxu0 0.0
        %1010 = vmatpush1.msra.mxu0 %v503
        %1011 = vmatprep.subr.mxu0 0.0
        %1012 = vmatpush1.msra.mxu0 %v504
        %1013 = vmatprep.subr.mxu0 0.0
        %1014 = vmatpush1.msra.mxu0 %v505
        %1015 = vmatprep.subr.mxu0 0.0
        %1016 = vmatpush1.msra.mxu0 %v506
        %1017 = vmatprep.subr.mxu0 0.0
        %1018 = vmatpush1.msra.mxu0 %v507
        %1019 = vmatprep.subr.mxu0 0.0
        %1020 = vmatpush1.msra.mxu0 %v508
        %1021 = vmatprep.subr.mxu0 0.0
        %1022 = vmatpush1.msra.mxu0 %v509
        %1023 = vmatprep.subr.mxu0 0.0
        %1024 = vmatpush1.msra.mxu0 %v510
        %1025 = vmatprep.subr.mxu0 0.0
        %1026 = vmatpush1.msra.mxu0 %v511
        %1027 = vmatprep.subr.mxu0 0.0
        %1028 = vmatpush1.msra.mxu0 %v512
        %1029 = vmatprep.subr.mxu0 0.0
        %1030 = vmatpush1.msra.mxu0 %v513
        %1031 = vmatprep.subr.mxu0 0.0
        %1032 = vmatpush1.msra.mxu0 0.0
        %1033 = vmatprep.subr.mxu0 0.0
        %1034 = vmatpush1.msra.mxu0 0.0
        %1035 = vmatprep.subr.mxu0 0.0
        %1036 = vmatpush1.msra.mxu0 0.0
        %1037 = vmatprep.subr.mxu0 0.0
        %1038 = vmatpush1.msra.mxu0 0.0
        %1039 = vmatprep.subr.mxu0 0.0
        %1040 = vmatpush1.msra.mxu0 0.0
        %1041 = vmatprep.subr.mxu0 0.0
        %1042 = vmatpush1.msra.mxu0 0.0
        %1043 = vmatprep.subr.mxu0 0.0
        %1044 = vmatpush1.msra.mxu0 0.0
        %1045 = vmatprep.subr.mxu0 0.0
        %1046 = vmatpush1.msra.mxu0 0.0
        %1047 = vmatprep.subr.mxu0 0.0
        %1048 = vmatpush1.msra.mxu0 0.0
        %1049 = vmatprep.subr.mxu0 0.0
        %1050 = vmatpush1.msra.mxu0 0.0
        %1051 = vmatprep.subr.mxu0 0.0
        %1052 = vmatpush1.msra.mxu0 0.0
        %1053 = vmatprep.subr.mxu0 0.0
        %1054 = vmatpush1.msra.mxu0 0.0
        %1055 = vmatprep.subr.mxu0 0.0
        %1056 = vmatpush1.msra.mxu0 0.0
        %1057 = vmatprep.subr.mxu0 0.0
        %1058 = vmatpush1.msra.mxu0 0.0
        %1059 = vmatprep.subr.mxu0 0.0
        %1060 = vmatpush1.msra.mxu0 0.0
        %1061 = vmatprep.subr.mxu0 0.0
        %1062 = vmatpush1.msra.mxu0 0.0
        %1063 = vmatprep.subr.mxu0 0.0
        %1064 = vmatpush1.msra.mxu0 0.0
        %1065 = vmatprep.subr.mxu0 0.0
        %1066 = vmatpush1.msra.mxu0 0.0
        %1067 = vmatprep.subr.mxu0 0.0
        %1068 = vmatpush1.msra.mxu0 0.0
        %1069 = vmatprep.subr.mxu0 0.0
        %1070 = vmatpush1.msra.mxu0 0.0
        %1071 = vmatprep.mubr.f32.mxu0 0.0
        %1072 = vmatmul.mubr.f32.gmra.mrb[0].mxu0 %v996
        %v1073 = vpop.f32.mrb[0].mxu0
        %v1074 = vadd.f32 %v992, %v1073
        %v1075 = vpop.f32.mrb[0].mxu0
        %1076 = vmatprep.mubr.f32.mxu0 0.0
        %1077 = vmatmul.mubr.f32.gmra.mrb[0].mxu0 %v999
        %v1078 = vpop.f32.mrb[0].mxu0
        %v1079 = vadd.f32 %v992, %v1078
        %v1080 = vpop.f32.mrb[0].mxu0
        %1081 = vmatprep.mubr.f32.mxu0 0.0
        %1082 = vmatmul.mubr.f32.gmra.mrb[0].mxu0 %v1002
        %v1083 = vpop.f32.mrb[0].mxu0
        %v1084 = vadd.f32 %v992, %v1083
        %v1085 = vpop.f32.mrb[0].mxu0
        %1086 = vmatprep.mubr.f32.mxu0 0.0
        %1087 = vmatmul.mubr.f32.gmra.mrb[0].mxu0 %v1005
        %v1088 = vpop.f32.mrb[0].mxu0
        %v1089 = vadd.f32 %v992, %v1088
        %v1090 = vpop.f32.mrb[0].mxu0
        %1091 = vdwg.mxu0
        %vm1092 = vcmp.gt.f32.partialorder %v1074, 0.0
        %vm1093 = vcmp.gt.f32.partialorder %v1079, 0.0
        %vm1094 = vcmp.gt.f32.partialorder %v1084, 0.0
        %vm1095 = vcmp.gt.f32.partialorder %v1089, 0.0
        %v1096 = vmul.f32 %v1074, 0.2
        %v1097 = vmul.f32 %v1079, 0.2
        %v1098 = vmul.f32 %v1084, 0.2
        %v1099 = vmul.f32 %v1089, 0.2
        %v1100 = vsel %vm1092, %v1074, %v1096
        %v1101 = vsel %vm1093, %v1079, %v1097
        %v1102 = vsel %vm1094, %v1084, %v1098
        %v1103 = vsel %vm1095, %v1089, %v1099
        %1104 = vst.msk [vmem:[%s390] sm:$0xff] %vm611, %v1100
        %1105 = vst.msk [vmem:[%s390 + $0x8] sm:$0xff] %vm611, %v1101
        %1106 = vst.msk [vmem:[%s390 + $0x10] sm:$0xff] %vm611, %v1102
        %1107 = vst.msk [vmem:[%s390 + $0x18] sm:$0xff] %vm611, %v1103
        %s1108 = sand.u32 %s224, 1
        %s1109 = sand.u32 %s224, 1
        %s1110 = smul.addr %s1109, 32
        %s1111 = scalar_lea.vmem [#allocation2], %s1110
        // Predicated region
        $region49: #{tpu_custom_call.1} parent=47 // pred_check
          %p1112 = pneg %p234
        $region50: #{tpu_custom_call.1} parent=47 // pred_check_branch
          %1114 = sbr.rel (%p1112) target = $region52
        $region51: #{tpu_custom_call.1} parent=47 // pred_region
          %s1115 = smul.u32 4, %s23
          %s1116 = ssub.s32 10, %s1115
          %p1117 = scmp.lt.s32.totalorder %s1116, 4
          %s1118 = scalar_select %p1117, %s1116, 4
          %s1119 = smul.u32 128, %s1118
          %p1120 = scmp.ne.s32.totalorder 0, %s1119
          %s1121 = smul.addr %s22, 10
          %s1122 = sadd.s32 %s1115, %s1121
          %s1123 = smul.addr %s1122, 8
          %s1124 = scalar_lea.vmem %s7, %s1123
          // Predicated region
          $region53: #{tpu_custom_call.1} parent=51 // pred_check
            %p1125 = pneg %p1120
          $region54: #{tpu_custom_call.1} parent=51 // pred_check_branch
            %1127 = sbr.rel (%p1125) target = $region56
          $region55: #{tpu_custom_call.1} parent=51 // pred_region
            // Predicated region
            $region57: #{tpu_custom_call.1} parent=55 // pred_check
              _
            $region58: #{tpu_custom_call.1} parent=55 // pred_check_branch
              %1129 = sbr.rel (0) target = $region60
            $region59: #{tpu_custom_call.1} parent=55 // pred_region
              // Predicated region
              $region79: #{tpu_custom_call.1} parent=59 // pred_check
                _
              $region80: #{tpu_custom_call.1} parent=59 // pred_check_branch
                %1184 = sbr.rel (0) target = $region82
              $region81: #{tpu_custom_call.1} parent=59 // pred_region
                %s1185 = sshrl.u32 %s1118, 2
                // While loop
                $region83: #{tpu_custom_call.1} parent=81 // loop_pre_header
                  _
                $region84: #{tpu_custom_call.1} parent=81 // loop_header
                  %s1187 = sphi 0, %s1189
                  %p1188 = scmp.ge.s32.totalorder %s1187, %s1185
                  %s1192 = sphi 0, %s1205
                  %s1193 = sphi %s1111, %s1208
                  %s1194 = sphi %s1124, %s1209
                $region85: #{tpu_custom_call.1} parent=81 // loop_header_branch
                  %1191 = sbr.rel (%p1188) target = $region89
                $region86: #{tpu_custom_call.1} parent=81 // loop_body
                  %v1195 = vld [vmem:[%s1193] sm:$0xff]
                  %1196 = vst [vmem:[%s1194] sm:$0xff] %v1195
                  %v1197 = vld [vmem:[%s1193 + $0x8] sm:$0xff]
                  %1198 = vst [vmem:[%s1194 + $0x8] sm:$0xff] %v1197
                  %v1199 = vld [vmem:[%s1193 + $0x10] sm:$0xff]
                  %1200 = vst [vmem:[%s1194 + $0x10] sm:$0xff] %v1199
                  %v1201 = vld [vmem:[%s1193 + $0x18] sm:$0xff]
                  %1202 = vst [vmem:[%s1194 + $0x18] sm:$0xff] %v1201
                  %s1203 = sadd.s32 1, %s1192
                  %p1204 = scmp.ge.s32.totalorder %s1203, %s1185
                  %s1205 = scalar_select %p1204, 0, %s1203
                  %s1206 = smul.u32 %s1205, 32
                  %s1207 = smul.u32 %s1205, 32
                  %s1208 = scalar_lea.vmem %s1111, %s1206 [#allocation2]
                  %s1209 = scalar_lea.vmem %s1124, %s1207
                $region87: #{tpu_custom_call.1} parent=81 // loop_footer
                  %s1189 = sadd.s32 %s1187, 1
                $region88: #{tpu_custom_call.1} parent=81 // loop_footer_branch
                  %1186 = sbr.rel target = $region84
                $region89: #{tpu_custom_call.1} parent=81 // loop_exit
                  _
                %s1210 = sshrl.u32 %s1118, 2
                %s1211 = sand.u32 %s1118, 3
                %s1212 = smul.u32 %s1210, 4
                %s1213 = smul.u32 8, %s1212
                %s1214 = scalar_lea.vmem %s1111, %s1213 [#allocation2]
                %s1215 = smul.u32 8, %s1212
                %s1216 = scalar_lea.vmem %s1124, %s1215
                // While loop
                $region90: #{tpu_custom_call.1} parent=81 // loop_pre_header
                  _
                $region91: #{tpu_custom_call.1} parent=81 // loop_header
                  %s1218 = sphi 0, %s1220
                  %p1219 = scmp.ge.s32.totalorder %s1218, %s1211
                  %s1223 = sphi 0, %s1230
                  %s1224 = sphi %s1214, %s1233
                  %s1225 = sphi %s1216, %s1234
                $region92: #{tpu_custom_call.1} parent=81 // loop_header_branch
                  %1222 = sbr.rel (%p1219) target = $region96
                $region93: #{tpu_custom_call.1} parent=81 // loop_body
                  %v1226 = vld [vmem:[%s1224] sm:$0xff]
                  %1227 = vst [vmem:[%s1225] sm:$0xff] %v1226
                  %s1228 = sadd.s32 1, %s1223
                  %p1229 = scmp.ge.s32.totalorder %s1228, %s1211
                  %s1230 = scalar_select %p1229, 0, %s1228
                  %s1231 = smul.u32 %s1230, 8
                  %s1232 = smul.u32 %s1230, 8
                  %s1233 = scalar_lea.vmem %s1214, %s1231 [#allocation2]
                  %s1234 = scalar_lea.vmem %s1216, %s1232
                $region94: #{tpu_custom_call.1} parent=81 // loop_footer
                  %s1220 = sadd.s32 %s1218, 1
                $region95: #{tpu_custom_call.1} parent=81 // loop_footer_branch
                  %1217 = sbr.rel target = $region91
                $region96: #{tpu_custom_call.1} parent=81 // loop_exit
                  _
              $region82: #{tpu_custom_call.1} parent=59 // pred_fallthru
                _
              // Predicated region
              $region97: #{tpu_custom_call.1} parent=59 // pred_check
                _
              $region98: #{tpu_custom_call.1} parent=59 // pred_check_branch
                %1236 = sbr.rel target = $region100
              $region99: #{tpu_custom_call.1} parent=59 // pred_region
                _
              $region100: #{tpu_custom_call.1} parent=59 // pred_fallthru
                _
            $region60: #{tpu_custom_call.1} parent=55 // pred_fallthru
              _
            // Predicated region
            $region61: #{tpu_custom_call.1} parent=55 // pred_check
              _
            $region62: #{tpu_custom_call.1} parent=55 // pred_check_branch
              %1131 = sbr.rel target = $region64
            $region63: #{tpu_custom_call.1} parent=55 // pred_region
              %s1133 = sshrl.u32 %s1118, 2
              // While loop
              $region65: #{tpu_custom_call.1} parent=63 // loop_pre_header
                _
              $region66: #{tpu_custom_call.1} parent=63 // loop_header
                %s1135 = sphi 0, %s1137
                %p1136 = scmp.ge.s32.totalorder %s1135, %s1133
                %s1140 = sphi 0, %s1153
                %s1141 = sphi %s1111, %s1156
                %s1142 = sphi %s1124, %s1157
              $region67: #{tpu_custom_call.1} parent=63 // loop_header_branch
                %1139 = sbr.rel (%p1136) target = $region71
              $region68: #{tpu_custom_call.1} parent=63 // loop_body
                %v1143 = vld [vmem:[%s1141] sm:$0xff]
                %1144 = vst [vmem:[%s1142] sm:$0xff] %v1143
                %v1145 = vld [vmem:[%s1141 + $0x8] sm:$0xff]
                %1146 = vst [vmem:[%s1142 + $0x8] sm:$0xff] %v1145
                %v1147 = vld [vmem:[%s1141 + $0x10] sm:$0xff]
                %1148 = vst [vmem:[%s1142 + $0x10] sm:$0xff] %v1147
                %v1149 = vld [vmem:[%s1141 + $0x18] sm:$0xff]
                %1150 = vst [vmem:[%s1142 + $0x18] sm:$0xff] %v1149
                %s1151 = sadd.s32 1, %s1140
                %p1152 = scmp.ge.s32.totalorder %s1151, %s1133
                %s1153 = scalar_select %p1152, 0, %s1151
                %s1154 = smul.u32 %s1153, 32
                %s1155 = smul.u32 %s1153, 32
                %s1156 = scalar_lea.vmem %s1111, %s1154 [#allocation2]
                %s1157 = scalar_lea.vmem %s1124, %s1155
              $region69: #{tpu_custom_call.1} parent=63 // loop_footer
                %s1137 = sadd.s32 %s1135, 1
              $region70: #{tpu_custom_call.1} parent=63 // loop_footer_branch
                %1134 = sbr.rel target = $region66
              $region71: #{tpu_custom_call.1} parent=63 // loop_exit
                _
              %s1158 = sshrl.u32 %s1118, 2
              %s1159 = sand.u32 %s1118, 3
              %s1160 = smul.u32 %s1158, 4
              %s1161 = smul.u32 8, %s1160
              %s1162 = scalar_lea.vmem %s1111, %s1161 [#allocation2]
              %s1163 = smul.u32 8, %s1160
              %s1164 = scalar_lea.vmem %s1124, %s1163
              // While loop
              $region72: #{tpu_custom_call.1} parent=63 // loop_pre_header
                _
              $region73: #{tpu_custom_call.1} parent=63 // loop_header
                %s1166 = sphi 0, %s1168
                %p1167 = scmp.ge.s32.totalorder %s1166, %s1159
                %s1171 = sphi 0, %s1178
                %s1172 = sphi %s1162, %s1181
                %s1173 = sphi %s1164, %s1182
              $region74: #{tpu_custom_call.1} parent=63 // loop_header_branch
                %1170 = sbr.rel (%p1167) target = $region78
              $region75: #{tpu_custom_call.1} parent=63 // loop_body
                %v1174 = vld [vmem:[%s1172] sm:$0xff]
                %1175 = vst [vmem:[%s1173] sm:$0xff] %v1174
                %s1176 = sadd.s32 1, %s1171
                %p1177 = scmp.ge.s32.totalorder %s1176, %s1159
                %s1178 = scalar_select %p1177, 0, %s1176
                %s1179 = smul.u32 %s1178, 8
                %s1180 = smul.u32 %s1178, 8
                %s1181 = scalar_lea.vmem %s1162, %s1179 [#allocation2]
                %s1182 = scalar_lea.vmem %s1164, %s1180
              $region76: #{tpu_custom_call.1} parent=63 // loop_footer
                %s1168 = sadd.s32 %s1166, 1
              $region77: #{tpu_custom_call.1} parent=63 // loop_footer_branch
                %1165 = sbr.rel target = $region73
              $region78: #{tpu_custom_call.1} parent=63 // loop_exit
                _
            $region64: #{tpu_custom_call.1} parent=55 // pred_fallthru
              _
          $region56: #{tpu_custom_call.1} parent=51 // pred_fallthru
            _
          %1237 = vnop
        $region52: #{tpu_custom_call.1} parent=47 // pred_fallthru
          _
      $region48: #{tpu_custom_call.1} parent=5 // pred_fallthru
        _
      %p1238 = scmp.le.s32.totalorder 2, %s13
      // Predicated region
      $region101: #{tpu_custom_call.1} parent=5 // pred_check
        %p1239 = pneg %p1238
      $region102: #{tpu_custom_call.1} parent=5 // pred_check_branch
        %1241 = sbr.rel (%p1239) target = $region104
      $region103: #{tpu_custom_call.1} parent=5 // pred_region
        %s1242 = ssub.s32 %s13, 2
        // Predicated region
        $region105: #{tpu_custom_call.1} parent=103 // pred_check
          %p1243 = pneg %p240
        $region106: #{tpu_custom_call.1} parent=103 // pred_check_branch
          %1245 = sbr.rel (%p1243) target = $region108
        $region107: #{tpu_custom_call.1} parent=103 // pred_region
          %s1246 = sand.u32 %s225, 1
          %s1247 = sand.u32 %s225, 1
          %s1248 = smul.addr %s1247, 32
          %s1249 = scalar_lea.vmem [#allocation2], %s1248
        $region108: #{tpu_custom_call.1} parent=103 // pred_fallthru
          _
      $region104: #{tpu_custom_call.1} parent=5 // pred_fallthru
        _
    $region6: #{tpu_custom_call.1} parent=1 // loop_footer
      %s17 = sadd.s32 1, %s13
    $region7: #{tpu_custom_call.1} parent=1 // loop_footer_branch
      %12 = sbr.rel target = $region3
    $region8: #{tpu_custom_call.1} parent=1 // loop_exit
      _

</llo_original>
